<compile_context>
chip_gen: v6e
topology: v6e:2x2x1
jax: 0.10.0
libtpu: 0.0.40
codegen_flags: <defaults>
</compile_context>

<pallas_src>
import jax
import jax.numpy as jnp
import numpy as np
from jax.experimental import pallas as pl
from jax.experimental.pallas import tpu as pltpu


# ----------------------------- Pallas kernel -------------------------------

def _gconv_fused_kernel(k2d_ref, src_ref, adjt_ref, texp_ref, ssum_ref, out_ref):
    """Fused per-edge SE(3) message + mean aggregation over one edge tile.

    k2d_ref  : [TE, Dout*Din]   bf16  flat per-edge kernels (lane-dense, all degrees fused)
    src_ref  : [TE, Din]        bf16  gathered source-node features
    adjt_ref : [TE, N]          bf16  one-hot(dst) / in_degree rows (mean aggregation)
    texp_ref : [Din, Dout*Din]  bf16  0/1 selector: replicates src across the Dout groups
    ssum_ref : [Dout*Din, Dout] bf16  0/1 block-sum: reduces each Din group
    out_ref  : [N, Dout]        f32   accumulator, resident across the whole edge grid
    """
    @pl.when(pl.program_id(0) == 0)
    def _():
        out_ref[...] = jnp.zeros_like(out_ref)

    # Replicate src across the Dout groups with a tiny MXU matmul; this keeps the
    # following multiply lane-dense without any lane<->sublane relayout.
    src_rep = jnp.dot(src_ref[...], texp_ref[...],
                      preferred_element_type=jnp.float32).astype(jnp.bfloat16)
    prod = k2d_ref[...] * src_rep                       # [TE, Dout*Din] VPU, full lanes

    # Per-edge message msg[e, o] = sum_i K[e, o, i] * src[e, i]:
    # block-sum over each Din group on the MXU (contraction depth = Dout*Din).
    msg = jnp.dot(prod, ssum_ref[...],
                  preferred_element_type=jnp.float32)   # [TE, Dout] f32

    # Scatter-mean over destinations: out[N, Dout] += adjT^T @ msg (contraction = TE).
    out_ref[...] += jax.lax.dot_general(
        adjt_ref[...], msg.astype(jnp.bfloat16),
        (((0,), (0,)), ((), ())), preferred_element_type=jnp.float32)


def gconv_message_mean(k2d, src_cat, adjT, texp, ssum, n_nodes, te=256):
    """pallas_call wrapper: fused per-edge message + scatter-mean over edge tiles."""
    E, kdim = k2d.shape
    din = src_cat.shape[1]
    dout = ssum.shape[1]
    assert kdim == dout * din

    # zero-pad edges to a multiple of the edge tile (zero rows contribute nothing)
    e_pad = ((E + te - 1) // te) * te
    if e_pad != E:
        pad = e_pad - E
        k2d = jnp.pad(k2d, ((0, pad), (0, 0)))
        src_cat = jnp.pad(src_cat, ((0, pad), (0, 0)))
        adjT = jnp.pad(adjT, ((0, pad), (0, 0)))

    grid = (e_pad // te,)
    return pl.pallas_call(
        _gconv_fused_kernel,
        out_shape=jax.ShapeDtypeStruct((n_nodes, dout), jnp.float32),
        grid_spec=pltpu.PrefetchScalarGridSpec(
            num_scalar_prefetch=0,
            grid=grid,
            in_specs=[
                pl.BlockSpec((te, kdim), lambda e: (e, 0)),       # flat per-edge kernels
                pl.BlockSpec((te, din), lambda e: (e, 0)),        # source features
                pl.BlockSpec((te, n_nodes), lambda e: (e, 0)),    # mean-aggregation rows
                pl.BlockSpec((din, kdim), lambda e: (0, 0)),      # constant expand matrix
                pl.BlockSpec((kdim, dout), lambda e: (0, 0)),     # constant block-sum matrix
            ],
            out_specs=pl.BlockSpec((n_nodes, dout), lambda e: (0, 0)),
        ),
        compiler_params=pltpu.CompilerParams(
            dimension_semantics=("arbitrary",),
            vmem_limit_bytes=32 * 1024 * 1024,
        ),
    )(k2d, src_cat, adjT, texp, ssum)


# ----------------------------- module glue (plain JAX) ---------------------

class Fiber:
    def __init__(self, struct_list):
        self.struct_list = list(struct_list)              # [(channels, degree), ...]
        self.struct_dict = {d: c for c, d in self.struct_list}
        self.degrees = [d for _, d in self.struct_list]


_MID_DIM = 32


def _init_linear(key, n_in, n_out):
    k1, k2 = jax.random.split(key)
    bound = 1.0 / np.sqrt(n_in)
    w = jax.random.uniform(k1, (n_out, n_in), jnp.float32, -bound, bound)
    b = jax.random.uniform(k2, (n_out,), jnp.float32, -bound, bound)
    return w, b


def _init_pairwise_conv(key, di, ci, do, co, n_dims_edge):
    nfreq = 2 * min(di, do) + 1
    ks = jax.random.split(key, 3)
    return {
        "l0": _init_linear(ks[0], n_dims_edge + 1, _MID_DIM),
        "l1": _init_linear(ks[1], _MID_DIM, _MID_DIM),
        "l2": _init_linear(ks[2], _MID_DIM, nfreq * ci * co),
        "di": di, "ci": ci, "do": do, "co": co, "nfreq": nfreq,
    }


def _apply_pairwise_conv(p, edge_feats, basis):
    """RadialFunc MLP (BatchNorm in eval mode == identity) + contraction with the basis."""
    def lin(pp, x):
        return x @ pp[0].T + pp[1]

    h = jax.nn.relu(lin(p["l0"], edge_feats))
    h = jax.nn.relu(lin(p["l1"], h))
    r = lin(p["l2"], h)                                   # [E, nfreq*ci*co]
    E = edge_feats.shape[0]
    di, ci, do, co, nfreq = p["di"], p["ci"], p["do"], p["co"], p["nfreq"]
    r = r.reshape(E, co, 1, ci, 1, nfreq)
    b = basis.reshape(E, 1, 2 * do + 1, 1, 2 * di + 1, nfreq)
    kern = jnp.sum(r * b, axis=-1)                        # [E, co, 2do+1, ci, 2di+1]
    return kern.reshape(E, co * (2 * do + 1), ci * (2 * di + 1))


def init_gconv_se3(key, f_in, f_out, self_interact, n_dims_edge):
    params = {"pconv": {}, "self": {}}
    n_pairs = len(f_in.struct_list) * len(f_out.struct_list)
    keys = jax.random.split(key, n_pairs + len(f_in.struct_list))
    idx = 0
    for ci, di in f_in.struct_list:
        for co, do in f_out.struct_list:
            params["pconv"][(di, do)] = _init_pairwise_conv(
                keys[idx], di, ci, do, co, n_dims_edge)
            idx += 1
    if self_interact:
        for ci, di in f_in.struct_list:
            if di in f_out.struct_dict:
                co = f_out.struct_dict[di]
                params["self"][di] = (
                    jax.random.normal(keys[idx], (co, ci), jnp.float32) / np.sqrt(ci))
                idx += 1
    return params


def _prepare(params, f_in, f_out, self_interact, src_idx, dst_idx,
             feat_dict, basis_dict, edge_w, radial, n_nodes):
    """Build fused, lane-dense kernel operands (shared by the Pallas path and the reference)."""
    edge_feats = jnp.concatenate([edge_w, radial], axis=-1)
    E = edge_feats.shape[0]

    # fused per-edge kernel over all (di -> do) blocks: [E, Dout_total, Din_total]
    k_blocks, out_slices, off = [], [], 0
    for co, do in f_out.struct_list:
        k_do = jnp.concatenate(
            [_apply_pairwise_conv(params["pconv"][(di, do)], edge_feats,
                                  basis_dict[(di, do)])
             for ci, di in f_in.struct_list], axis=-1)    # [E, co*(2do+1), Din]
        k_blocks.append(k_do)
        width = co * (2 * do + 1)
        out_slices.append((do, co, off, width))
        off += width
    k_all = jnp.concatenate(k_blocks, axis=1)             # [E, Dout, Din]
    _, dout, din = k_all.shape

    src_cat = jnp.concatenate(
        [feat_dict[di][src_idx].reshape(E, -1) for ci, di in f_in.struct_list], axis=-1)

    # dense one-hot mean-aggregation matrix (fine at small N; see TODO at top for big graphs)
    deg = jnp.zeros((n_nodes,), jnp.float32).at[dst_idx].add(1.0)
    inv_deg = jnp.where(deg > 0, 1.0 / deg, 0.0)
    adjT = jnp.zeros((E, n_nodes), jnp.float32).at[
        jnp.arange(E), dst_idx].set(inv_deg[dst_idx])

    # constant 0/1 helper matrices for the in-kernel MXU formulation
    texp = jnp.tile(jnp.eye(din, dtype=jnp.float32), (1, dout))          # [Din, Dout*Din]
    ssum = jnp.repeat(jnp.eye(dout, dtype=jnp.float32), din, axis=0)     # [Dout*Din, Dout]

    # self-interaction hoisted to node level: the mean over in-edges of W @ feat[dst]
    # equals W @ feat[node] whenever in_degree > 0 (mean weights sum to 1), else 0.
    node_mask = (deg > 0).astype(jnp.float32)
    self_terms = {}
    if self_interact:
        for co, do in f_out.struct_list:
            if do in params["self"]:
                w = params["self"][do]                                   # [co, ci]
                self_terms[do] = node_mask[:, None, None] * jnp.einsum(
                    "oc,ncm->nom", w, feat_dict[do])

    return {
        "k2d": k_all.reshape(E, dout * din).astype(jnp.bfloat16),
        "src": src_cat.astype(jnp.bfloat16),
        "adjT": adjT.astype(jnp.bfloat16),
        "texp": texp.astype(jnp.bfloat16),
        "ssum": ssum.astype(jnp.bfloat16),
        "self_terms": self_terms,
        "out_slices": out_slices,
        "dout": dout,
        "din": din,
    }


def gconv_se3_forward(params, f_in, f_out, self_interact, src_idx, dst_idx,
                      feat_dict, basis_dict, edge_w, radial, n_nodes, te=256):
    prep = _prepare(params, f_in, f_out, self_interact, src_idx, dst_idx,
                    feat_dict, basis_dict, edge_w, radial, n_nodes)
    out_all = gconv_message_mean(prep["k2d"], prep["src"], prep["adjT"],
                                 prep["texp"], prep["ssum"], n_nodes, te=te)
    outputs = {}
    for do, co, off, width in prep["out_slices"]:
        out_do = out_all[:, off:off + width].reshape(n_nodes, co, 2 * do + 1)
        if do in prep["self_terms"]:
            out_do = out_do + prep["self_terms"][do]
        outputs[do] = out_do
    return outputs


def gconv_se3_reference(params, f_in, f_out, self_interact, src_idx, dst_idx,
                        feat_dict, basis_dict, edge_w, radial, n_nodes):
    """Pure-JAX reference with identical semantics (incl. the bf16 operand cast)."""
    prep = _prepare(params, f_in, f_out, self_interact, src_idx, dst_idx,
                    feat_dict, basis_dict, edge_w, radial, n_nodes)
    E = prep["src"].shape[0]
    k3d = prep["k2d"].astype(jnp.float32).reshape(E, prep["dout"], prep["din"])
    src = prep["src"].astype(jnp.float32)
    adjT = prep["adjT"].astype(jnp.float32)
    msg = jnp.einsum("eoi,ei->eo", k3d, src)              # per-edge message
    out_all = jnp.einsum("en,eo->no", adjT, msg)          # mean aggregation
    outputs = {}
    for do, co, off, width in prep["out_slices"]:
        out_do = out_all[:, off:off + width].reshape(n_nodes, co, 2 * do + 1)
        if do in prep["self_terms"]:
            out_do = out_do + prep["self_terms"][do]
        outputs[do] = out_do
    return outputs


# ----------------------------------- main -----------------------------------

if __name__ == "__main__":
    key = jax.random.PRNGKey(0)

    n_nodes = 24
    n_dims_edge = 4
    f_in = Fiber([(4, 0), (4, 1)])     # 4 channels of degree 0 and degree 1
    f_out = Fiber([(4, 0), (4, 1)])
    self_interact = True

    # fully-connected graph (with self-loops): edge (i*N + j) goes j -> i
    dst_idx = jnp.repeat(jnp.arange(n_nodes), n_nodes)
    src_idx = jnp.tile(jnp.arange(n_nodes), n_nodes)
    n_edges = int(dst_idx.shape[0])    # 576 -> zero-padded to 768 inside the wrapper

    keys = jax.random.split(key, 8)
    params = init_gconv_se3(keys[0], f_in, f_out, self_interact, n_dims_edge)

    feat_dict = {
        0: jax.random.normal(keys[1], (n_nodes, 4, 1), jnp.float32),
        1: jax.random.normal(keys[2], (n_nodes, 4, 3), jnp.float32),
    }
    basis_dict = {}
    pair_list = [(di, do) for di in f_in.degrees for do in f_out.degrees]
    bkeys = jax.random.split(keys[3], len(pair_list))
    for i, (di, do) in enumerate(pair_list):
        nfreq = 2 * min(di, do) + 1
        basis_dict[(di, do)] = jax.random.normal(
            bkeys[i], (n_edges, 2 * do + 1, 2 * di + 1, nfreq), jnp.float32)
    edge_w = jax.random.normal(keys[4], (n_edges, n_dims_edge), jnp.float32)
    radial = jax.random.uniform(keys[5], (n_edges, 1), jnp.float32)

    outputs = gconv_se3_forward(params, f_in, f_out, self_interact, src_idx, dst_idx,
                                feat_dict, basis_dict, edge_w, radial, n_nodes, te=256)
    outputs = {k: jax.block_until_ready(v) for k, v in outputs.items()}

    ref = gconv_se3_reference(params, f_in, f_out, self_interact, src_idx, dst_idx,
                              feat_dict, basis_dict, edge_w, radial, n_nodes)
    # bf16 operands (review-recommended) -> compare against the bf16-operand reference
    # with loosened tolerances (f32 accumulation on both sides).
    for do in f_out.degrees:
        np.testing.assert_allclose(np.asarray(outputs[do]), np.asarray(ref[do]),
                                   rtol=2e-2, atol=2e-2)

    print("KERNEL_OK")
</pallas_src>

<mosaic_0001>
module attributes {stable_mosaic.version = 11 : i64} {
  func.func @_gconv_fused_kernel(%arg0: i32, %arg1: memref<256x256xbf16, #tpu.memory_space<vmem>>, %arg2: memref<256x16xbf16, #tpu.memory_space<vmem>>, %arg3: memref<256x24xbf16, #tpu.memory_space<vmem>>, %arg4: memref<16x256xbf16, #tpu.memory_space<vmem>>, %arg5: memref<256x16xbf16, #tpu.memory_space<vmem>>, %arg6: memref<24x16xf32, #tpu.memory_space<vmem>>) attributes {dimension_semantics = [#tpu.dimension_semantics<arbitrary>], iteration_bounds = array<i64: 3>, scalar_prefetch = 0 : i64, scratch_operands = 0 : i64, tpu.core_type = #tpu.core_type<tc>, window_params = [{transform_indices = @transform_0, window_bounds = array<i64: 256, 256>}, {transform_indices = @transform_1, window_bounds = array<i64: 256, 16>}, {transform_indices = @transform_2, window_bounds = array<i64: 256, 24>}, {pipeline_mode = #tpu.pipeline_mode<synchronous>, transform_indices = @transform_3, window_bounds = array<i64: 16, 256>}, {pipeline_mode = #tpu.pipeline_mode<synchronous>, transform_indices = @transform_4, window_bounds = array<i64: 256, 16>}, {pipeline_mode = #tpu.pipeline_mode<synchronous>, transform_indices = @transform_5, window_bounds = array<i64: 24, 16>}]} {
    %c0_i32 = arith.constant 0 : i32
    %0 = arith.cmpi eq, %arg0, %c0_i32 : i32
    %1 = arith.extui %0 : i1 to i32
    %c0_i32_0 = arith.constant 0 : i32
    %2 = arith.cmpi ne, %1, %c0_i32_0 : i32
    scf.if %2 {
      %cst_16 = arith.constant 0.000000e+00 : f32
      %17 = vector.broadcast %cst_16 : f32 to vector<24x16xf32>
      %c0_17 = arith.constant 0 : index
      %c0_18 = arith.constant 0 : index
      %18 = vector.load %arg6[%c0_17, %c0_18] : memref<24x16xf32, #tpu.memory_space<vmem>>, vector<24x16xf32>
      tpu.vector_store %arg6[%c0_17, %c0_18], %17 {strides = array<i32>} : memref<24x16xf32, #tpu.memory_space<vmem>>, vector<24x16xf32>,
    } else {
    }
    %c0 = arith.constant 0 : index
    %c0_1 = arith.constant 0 : index
    %3 = vector.load %arg2[%c0, %c0_1] : memref<256x16xbf16, #tpu.memory_space<vmem>>, vector<256x16xbf16>
    %c0_2 = arith.constant 0 : index
    %c0_3 = arith.constant 0 : index
    %4 = vector.load %arg4[%c0_2, %c0_3] : memref<16x256xbf16, #tpu.memory_space<vmem>>, vector<16x256xbf16>
    %cst = arith.constant dense<0.000000e+00> : vector<256x256xf32>
    %5 = tpu.matmul %3, %4, %cst {dimension_numbers = #tpu.dot_dimension_numbers<[1], [0], [0], [1], [0, 0, 1, 1], [], []>} : vector<256x16xbf16>, vector<16x256xbf16>, vector<256x256xf32> -> vector<256x256xf32>
    %6 = arith.truncf %5 : vector<256x256xf32> to vector<256x256xbf16>
    %c0_4 = arith.constant 0 : index
    %c0_5 = arith.constant 0 : index
    %7 = vector.load %arg1[%c0_4, %c0_5] : memref<256x256xbf16, #tpu.memory_space<vmem>>, vector<256x256xbf16>
    %8 = arith.mulf %7, %6 : vector<256x256xbf16>
    %c0_6 = arith.constant 0 : index
    %c0_7 = arith.constant 0 : index
    %9 = vector.load %arg5[%c0_6, %c0_7] : memref<256x16xbf16, #tpu.memory_space<vmem>>, vector<256x16xbf16>
    %cst_8 = arith.constant dense<0.000000e+00> : vector<256x16xf32>
    %10 = tpu.matmul %8, %9, %cst_8 {dimension_numbers = #tpu.dot_dimension_numbers<[1], [0], [0], [1], [0, 0, 1, 1], [], []>} : vector<256x256xbf16>, vector<256x16xbf16>, vector<256x16xf32> -> vector<256x16xf32>
    %c0_9 = arith.constant 0 : index
    %c0_10 = arith.constant 0 : index
    %11 = vector.load %arg6[%c0_9, %c0_10] : memref<24x16xf32, #tpu.memory_space<vmem>>, vector<24x16xf32>
    %c0_11 = arith.constant 0 : index
    %c0_12 = arith.constant 0 : index
    %12 = vector.load %arg3[%c0_11, %c0_12] : memref<256x24xbf16, #tpu.memory_space<vmem>>, vector<256x24xbf16>
    %13 = arith.truncf %10 : vector<256x16xf32> to vector<256x16xbf16>
    %cst_13 = arith.constant dense<0.000000e+00> : vector<24x16xf32>
    %14 = tpu.matmul %12, %13, %cst_13 {dimension_numbers = #tpu.dot_dimension_numbers<[0], [0], [1], [1], [0, 1, 1, 1], [], []>} : vector<256x24xbf16>, vector<256x16xbf16>, vector<24x16xf32> -> vector<24x16xf32>
    %15 = arith.addf %11, %14 : vector<24x16xf32>
    %c0_14 = arith.constant 0 : index
    %c0_15 = arith.constant 0 : index
    %16 = vector.load %arg6[%c0_14, %c0_15] : memref<24x16xf32, #tpu.memory_space<vmem>>, vector<24x16xf32>
    tpu.vector_store %arg6[%c0_14, %c0_15], %15 {strides = array<i32>} : memref<24x16xf32, #tpu.memory_space<vmem>>, vector<24x16xf32>,
    return
  }
  func.func @transform_0(%arg0: i32) -> (i32, i32) {
    %c0_i32 = arith.constant 0 : i32
    %c0_i32_0 = arith.constant 0 : i32
    return %arg0, %c0_i32 : i32, i32
  }
  func.func @transform_1(%arg0: i32) -> (i32, i32) {
    %c0_i32 = arith.constant 0 : i32
    %c0_i32_0 = arith.constant 0 : i32
    return %arg0, %c0_i32 : i32, i32
  }
  func.func @transform_2(%arg0: i32) -> (i32, i32) {
    %c0_i32 = arith.constant 0 : i32
    %c0_i32_0 = arith.constant 0 : i32
    return %arg0, %c0_i32 : i32, i32
  }
  func.func @transform_3(%arg0: i32) -> (i32, i32) {
    %c0_i32 = arith.constant 0 : i32
    %c0_i32_0 = arith.constant 0 : i32
    %c0_i32_1 = arith.constant 0 : i32
    return %c0_i32, %c0_i32_0 : i32, i32
  }
  func.func @transform_4(%arg0: i32) -> (i32, i32) {
    %c0_i32 = arith.constant 0 : i32
    %c0_i32_0 = arith.constant 0 : i32
    %c0_i32_1 = arith.constant 0 : i32
    return %c0_i32, %c0_i32_0 : i32, i32
  }
  func.func @transform_5(%arg0: i32) -> (i32, i32) {
    %c0_i32 = arith.constant 0 : i32
    %c0_i32_0 = arith.constant 0 : i32
    %c0_i32_1 = arith.constant 0 : i32
    return %c0_i32, %c0_i32_0 : i32, i32
  }
}

</mosaic_0001>

<llo_original>
// kernel: tpu_custom_call.1
$region0: #{tpu_custom_call.1}
  #allocation0 [shape = 'u32[]', space=smem, size = 0x4, offset = 0x4, fixed_abs, tag = 'smem constant byte address 0x4 - core index']
  #allocation1 [shape = 'u32[144,128]{1,0:T(1,128)}', space=vmem, size = 0x12000, scoped, tag = 'internal scratch']
  %s0 = inlined_call_operand.vmem [shape: bf16[768,256], index: 0, kind: input, shape index: {}]
  %s1 = inlined_call_operand.vmem [shape: bf16[768,16], index: 1, kind: input, shape index: {}]
  %s2 = inlined_call_operand.vmem [shape: bf16[768,24], index: 2, kind: input, shape index: {}]
  %s3 = inlined_call_operand.vmem [shape: bf16[16,256], index: 3, kind: input, shape index: {}]
  %s4 = inlined_call_operand.vmem [shape: bf16[256,16], index: 4, kind: input, shape index: {}]
  %s5 = inlined_call_operand.vmem [shape: f32[24,16], index: 5, kind: output, shape index: {}]
  %s6 = sld [smem:[#allocation0]]
  $region57: #{tpu_custom_call.1} parent=0
    _
  %s8 = ssub.s32 1, %s6
  %s9 = scalar_select 0, %s8, %s6
  loop: start=0, step=1, limit=5
  $region2: #{tpu_custom_call.1} parent=0 // loop_pre_header
    _
  $region3: #{tpu_custom_call.1} parent=0 // loop_header
    %s11 = sphi 0, %s15
    %p12 = scmp.ge.s32.totalorder %s11, 5
    %s21 = sphi 0, %s23
    %s24 = sphi 0, %s21
    %s25 = sphi 0, %s24
    %s41 = sphi 0, %s25
    %s47 = sphi 0, %s49
    %s50 = sphi 0, %s47
    %s51 = sphi 0, %s50
    %s67 = sphi 0, %s51
    %s73 = sphi 0, %s75
    %s76 = sphi 0, %s73
    %s77 = sphi 0, %s76
    %s93 = sphi 0, %s77
    %s97 = sphi 0, %s97
    %s99 = sphi 0, %s97
    %s100 = sphi 0, %s99
    %s114 = sphi 0, %s100
    %s118 = sphi 0, %s118
    %s120 = sphi 0, %s118
    %s121 = sphi 0, %s120
    %s135 = sphi 0, %s121
    %s139 = sphi 0, %s139
    %s141 = sphi 0, %s139
    %s142 = sphi 0, %s141
    %s156 = sphi 0, %s142
  $region4: #{tpu_custom_call.1} parent=0 // loop_header_branch
    %14 = sbr.rel (%p12) target = $region8
  $region5: #{tpu_custom_call.1} parent=0 // loop_body
    %s16 = ssub.s32 %s11, 1
    %s17 = ssub.s32 %s11, 2
    %s18 = sadd.s32 %s11, 1
    %s19 = ssub.s32 %s11, %s18
    %p20 = scmp.eq.s32.totalorder %s19, 0
    %s22 = sadd.s32 %s21, 1
    %s23 = scalar_select %p20, %s21, %s22
    %p26 = pneg %p20
    %p27 = scmp.eq.s32.totalorder %s11, 2
    %p28 = por %p26, %p27
    %p29 = scmp.ne.s32.totalorder %s21, %s24
    %p30 = scmp.eq.s32.totalorder %s11, 0
    %p31 = por %p29, %p30
    %p32 = scmp.ne.s32.totalorder %s21, %s24
    %p33 = scmp.eq.s32.totalorder %s16, 2
    %p34 = por %p32, %p33
    %p35 = scmp.ne.s32.totalorder %s24, %s25
    %p36 = scmp.eq.s32.totalorder %s16, 0
    %p37 = por %p35, %p36
    %p38 = scmp.ne.s32.totalorder %s24, %s25
    %p39 = scmp.eq.s32.totalorder %s17, 2
    %p40 = por %p38, %p39
    %p42 = scmp.ne.s32.totalorder %s25, %s41
    %p43 = scmp.eq.s32.totalorder %s17, 0
    %p44 = por %p42, %p43
    %s45 = ssub.s32 %s11, %s18
    %p46 = scmp.eq.s32.totalorder %s45, 0
    %s48 = sadd.s32 %s47, 1
    %s49 = scalar_select %p46, %s47, %s48
    %p52 = pneg %p46
    %p53 = scmp.eq.s32.totalorder %s11, 2
    %p54 = por %p52, %p53
    %p55 = scmp.ne.s32.totalorder %s47, %s50
    %p56 = scmp.eq.s32.totalorder %s11, 0
    %p57 = por %p55, %p56
    %p58 = scmp.ne.s32.totalorder %s47, %s50
    %p59 = scmp.eq.s32.totalorder %s16, 2
    %p60 = por %p58, %p59
    %p61 = scmp.ne.s32.totalorder %s50, %s51
    %p62 = scmp.eq.s32.totalorder %s16, 0
    %p63 = por %p61, %p62
    %p64 = scmp.ne.s32.totalorder %s50, %s51
    %p65 = scmp.eq.s32.totalorder %s17, 2
    %p66 = por %p64, %p65
    %p68 = scmp.ne.s32.totalorder %s51, %s67
    %p69 = scmp.eq.s32.totalorder %s17, 0
    %p70 = por %p68, %p69
    %s71 = ssub.s32 %s11, %s18
    %p72 = scmp.eq.s32.totalorder %s71, 0
    %s74 = sadd.s32 %s73, 1
    %s75 = scalar_select %p72, %s73, %s74
    %p78 = pneg %p72
    %p79 = scmp.eq.s32.totalorder %s11, 2
    %p80 = por %p78, %p79
    %p81 = scmp.ne.s32.totalorder %s73, %s76
    %p82 = scmp.eq.s32.totalorder %s11, 0
    %p83 = por %p81, %p82
    %p84 = scmp.ne.s32.totalorder %s73, %s76
    %p85 = scmp.eq.s32.totalorder %s16, 2
    %p86 = por %p84, %p85
    %p87 = scmp.ne.s32.totalorder %s76, %s77
    %p88 = scmp.eq.s32.totalorder %s16, 0
    %p89 = por %p87, %p88
    %p90 = scmp.ne.s32.totalorder %s76, %s77
    %p91 = scmp.eq.s32.totalorder %s17, 2
    %p92 = por %p90, %p91
    %p94 = scmp.ne.s32.totalorder %s77, %s93
    %p95 = scmp.eq.s32.totalorder %s17, 0
    %p96 = por %p94, %p95
    %s98 = sadd.s32 %s97, 1
    %p101 = scmp.eq.s32.totalorder %s11, 2
    %p102 = scmp.ne.s32.totalorder %s97, %s99
    %p103 = scmp.eq.s32.totalorder %s11, 0
    %p104 = por %p102, %p103
    %p105 = scmp.ne.s32.totalorder %s97, %s99
    %p106 = scmp.eq.s32.totalorder %s16, 2
    %p107 = por %p105, %p106
    %p108 = scmp.ne.s32.totalorder %s99, %s100
    %p109 = scmp.eq.s32.totalorder %s16, 0
    %p110 = por %p108, %p109
    %p111 = scmp.ne.s32.totalorder %s99, %s100
    %p112 = scmp.eq.s32.totalorder %s17, 2
    %p113 = por %p111, %p112
    %p115 = scmp.ne.s32.totalorder %s100, %s114
    %p116 = scmp.eq.s32.totalorder %s17, 0
    %p117 = por %p115, %p116
    %s119 = sadd.s32 %s118, 1
    %p122 = scmp.eq.s32.totalorder %s11, 2
    %p123 = scmp.ne.s32.totalorder %s118, %s120
    %p124 = scmp.eq.s32.totalorder %s11, 0
    %p125 = por %p123, %p124
    %p126 = scmp.ne.s32.totalorder %s118, %s120
    %p127 = scmp.eq.s32.totalorder %s16, 2
    %p128 = por %p126, %p127
    %p129 = scmp.ne.s32.totalorder %s120, %s121
    %p130 = scmp.eq.s32.totalorder %s16, 0
    %p131 = por %p129, %p130
    %p132 = scmp.ne.s32.totalorder %s120, %s121
    %p133 = scmp.eq.s32.totalorder %s17, 2
    %p134 = por %p132, %p133
    %p136 = scmp.ne.s32.totalorder %s121, %s135
    %p137 = scmp.eq.s32.totalorder %s17, 0
    %p138 = por %p136, %p137
    %s140 = sadd.s32 %s139, 1
    %p143 = scmp.eq.s32.totalorder %s11, 2
    %p144 = scmp.ne.s32.totalorder %s139, %s141
    %p145 = scmp.eq.s32.totalorder %s11, 0
    %p146 = por %p144, %p145
    %p147 = scmp.ne.s32.totalorder %s139, %s141
    %p148 = scmp.eq.s32.totalorder %s16, 2
    %p149 = por %p147, %p148
    %p150 = scmp.ne.s32.totalorder %s141, %s142
    %p151 = scmp.eq.s32.totalorder %s16, 0
    %p152 = por %p150, %p151
    %p153 = scmp.ne.s32.totalorder %s141, %s142
    %p154 = scmp.eq.s32.totalorder %s17, 2
    %p155 = por %p153, %p154
    %p157 = scmp.ne.s32.totalorder %s142, %s156
    %p158 = scmp.eq.s32.totalorder %s17, 0
    %p159 = por %p157, %p158
    %p160 = scmp.le.s32.totalorder 1, %s11
    %p161 = scmp.lt.s32.totalorder %s11, 4
    %p162 = pnand %p160, %p161
    %p163 = pneg %p162
    // Predicated region
    $region9: #{tpu_custom_call.1} parent=5 // pred_check
      _
    $region10: #{tpu_custom_call.1} parent=5 // pred_check_branch
      %165 = sbr.rel (%p162) target = $region12
    $region11: #{tpu_custom_call.1} parent=5 // pred_region
      %s166 = ssub.s32 %s11, 1
      // Predicated region
      $region13: #{tpu_custom_call.1} parent=11 // pred_check
        %p167 = pneg %p110
      $region14: #{tpu_custom_call.1} parent=11 // pred_check_branch
        %169 = sbr.rel (%p167) target = $region16
      $region15: #{tpu_custom_call.1} parent=11 // pred_region
        _
      $region16: #{tpu_custom_call.1} parent=11 // pred_fallthru
        _
      // Predicated region
      $region17: #{tpu_custom_call.1} parent=11 // pred_check
        %p170 = pneg %p131
      $region18: #{tpu_custom_call.1} parent=11 // pred_check_branch
        %172 = sbr.rel (%p170) target = $region20
      $region19: #{tpu_custom_call.1} parent=11 // pred_region
        _
      $region20: #{tpu_custom_call.1} parent=11 // pred_fallthru
        _
    $region12: #{tpu_custom_call.1} parent=5 // pred_fallthru
      _
    %p173 = scmp.lt.s32.totalorder %s11, 3
    // Predicated region
    $region21: #{tpu_custom_call.1} parent=5 // pred_check
      %p174 = pneg %p173
    $region22: #{tpu_custom_call.1} parent=5 // pred_check_branch
      %176 = sbr.rel (%p174) target = $region24
    $region23: #{tpu_custom_call.1} parent=5 // pred_region
      // Predicated region
      $region25: #{tpu_custom_call.1} parent=23 // pred_check
        %p177 = pneg %p31
      $region26: #{tpu_custom_call.1} parent=23 // pred_check_branch
        %179 = sbr.rel (%p177) target = $region28
      $region27: #{tpu_custom_call.1} parent=23 // pred_region
        %s180 = smul.u32 32, %s11
        %p181 = scmp.lt.s32.totalorder %s180, 95
        %s182 = scalar_select %p181, %s180, 95
        %s183 = smul.addr %s182, 2
        %s184 = smul.addr %s183, 4
        %s185 = scalar_lea.vmem %s0, %s184
        %s186 = smul.u32 32, %s11
      $region28: #{tpu_custom_call.1} parent=23 // pred_fallthru
        _
      // Predicated region
      $region29: #{tpu_custom_call.1} parent=23 // pred_check
        %p187 = pneg %p57
      $region30: #{tpu_custom_call.1} parent=23 // pred_check_branch
        %189 = sbr.rel (%p187) target = $region32
      $region31: #{tpu_custom_call.1} parent=23 // pred_region
        %s190 = smul.u32 32, %s11
        %p191 = scmp.lt.s32.totalorder %s190, 95
        %s192 = scalar_select %p191, %s190, 95
        %s193 = smul.addr %s192, 4
        %s194 = scalar_lea.vmem %s1, %s193
        %s195 = smul.u32 32, %s11
      $region32: #{tpu_custom_call.1} parent=23 // pred_fallthru
        _
      // Predicated region
      $region33: #{tpu_custom_call.1} parent=23 // pred_check
        %p196 = pneg %p83
      $region34: #{tpu_custom_call.1} parent=23 // pred_check_branch
        %198 = sbr.rel (%p196) target = $region36
      $region35: #{tpu_custom_call.1} parent=23 // pred_region
        %s199 = smul.u32 32, %s11
        %p200 = scmp.lt.s32.totalorder %s199, 95
        %s201 = scalar_select %p200, %s199, 95
        %s202 = smul.addr %s201, 4
        %s203 = scalar_lea.vmem %s2, %s202
        %s204 = smul.u32 32, %s11
      $region36: #{tpu_custom_call.1} parent=23 // pred_fallthru
        _
    $region24: #{tpu_custom_call.1} parent=5 // pred_fallthru
      _
    %p205 = scmp.le.s32.totalorder 1, %s11
    %p206 = scmp.lt.s32.totalorder %s11, 4
    %p207 = pnand %p205, %p206
    %p208 = pneg %p207
    // Predicated region
    $region37: #{tpu_custom_call.1} parent=5 // pred_check
      _
    $region38: #{tpu_custom_call.1} parent=5 // pred_check_branch
      %210 = sbr.rel (%p207) target = $region40
    $region39: #{tpu_custom_call.1} parent=5 // pred_region
      %s211 = ssub.s32 %s11, 1
      %s212 = smul.u32 32, %s16
      %p213 = scmp.lt.s32.totalorder %s212, 95
      %s214 = scalar_select %p213, %s212, 95
      %s215 = smul.addr %s214, 2
      %s216 = smul.addr %s215, 4
      %s217 = scalar_lea.vmem %s0, %s216
      %p218 = pneg %p37
      %p219 = pneg %p34
      %s220 = smul.u32 32, %s16
      %p221 = scmp.lt.s32.totalorder %s220, 95
      %s222 = scalar_select %p221, %s220, 95
      %s223 = smul.addr %s222, 4
      %s224 = scalar_lea.vmem %s1, %s223
      %p225 = pneg %p63
      %p226 = pneg %p60
      %s227 = smul.u32 32, %s16
      %p228 = scmp.lt.s32.totalorder %s227, 95
      %s229 = scalar_select %p228, %s227, 95
      %s230 = smul.addr %s229, 4
      %s231 = scalar_lea.vmem %s2, %s230
      %p232 = pneg %p89
      %p233 = pneg %p86
      %p234 = pneg %p110
      %p235 = pneg %p107
      %p236 = pneg %p131
      %p237 = pneg %p128
      %p238 = pneg %p152
      %p239 = pneg %p149
      %s240 = smul.u32 32, %s16
      %p241 = scmp.lt.s32.totalorder %s240, 95
      %s242 = scalar_select %p241, %s240, 95
      %s243 = smul.addr %s242, 2
      %s244 = smul.addr %s243, 4
      %s245 = scalar_lea.vmem %s0, %s244
      %s246 = smul.u32 32, %s16
      %s247 = smul.u32 32, %s16
      %p248 = scmp.lt.s32.totalorder %s247, 95
      %s249 = scalar_select %p248, %s247, 95
      %s250 = smul.addr %s249, 4
      %s251 = scalar_lea.vmem %s1, %s250
      %s252 = smul.u32 32, %s16
      %s253 = smul.u32 32, %s16
      %p254 = scmp.lt.s32.totalorder %s253, 95
      %s255 = scalar_select %p254, %s253, 95
      %s256 = smul.addr %s255, 4
      %s257 = scalar_lea.vmem %s2, %s256
      %s258 = smul.u32 32, %s16
      %p260 = scmp.eq.s32.totalorder %s16, 0
      // Predicated region
      $region41: #{tpu_custom_call.1} parent=39 // pred_check
        %p261 = pneg %p260
      $region42: #{tpu_custom_call.1} parent=39 // pred_check_branch
        %263 = sbr.rel (%p261) target = $region44
      $region43: #{tpu_custom_call.1} parent=39 // pred_region
        %vm264 = vcmask 130048
        %265 = vst.msk [vmem:[%s5] sm:$0xff] %vm264, 0.0
        %266 = vst.msk [vmem:[%s5 + $0x8] sm:$0xff] %vm264, 0.0
        %267 = vst.msk [vmem:[%s5 + $0x10] sm:$0xff] %vm264, 0.0
      $region44: #{tpu_custom_call.1} parent=39 // pred_fallthru
        _
      %v268 = vld [vmem:[%s251] sm:$0xf]
      %v269 = vld [vmem:[%s251 + $0x4] sm:$0xf]
      %v270 = vld [vmem:[%s251 + $0x8] sm:$0xf]
      %v271 = vld [vmem:[%s251 + $0xc] sm:$0xf]
      %v272 = vld [vmem:[%s251 + $0x10] sm:$0xf]
      %v273 = vld [vmem:[%s251 + $0x14] sm:$0xf]
      %v274 = vld [vmem:[%s251 + $0x18] sm:$0xf]
      %v275 = vld [vmem:[%s251 + $0x1c] sm:$0xf]
      %v276 = vld [vmem:[%s251 + $0x20] sm:$0xf]
      %v277 = vld [vmem:[%s251 + $0x24] sm:$0xf]
      %v278 = vld [vmem:[%s251 + $0x28] sm:$0xf]
      %v279 = vld [vmem:[%s251 + $0x2c] sm:$0xf]
      %v280 = vld [vmem:[%s251 + $0x30] sm:$0xf]
      %v281 = vld [vmem:[%s251 + $0x34] sm:$0xf]
      %v282 = vld [vmem:[%s251 + $0x38] sm:$0xf]
      %v283 = vld [vmem:[%s251 + $0x3c] sm:$0xf]
      %v284 = vld [vmem:[%s251 + $0x40] sm:$0xf]
      %v285 = vld [vmem:[%s251 + $0x44] sm:$0xf]
      %v286 = vld [vmem:[%s251 + $0x48] sm:$0xf]
      %v287 = vld [vmem:[%s251 + $0x4c] sm:$0xf]
      %v288 = vld [vmem:[%s251 + $0x50] sm:$0xf]
      %v289 = vld [vmem:[%s251 + $0x54] sm:$0xf]
      %v290 = vld [vmem:[%s251 + $0x58] sm:$0xf]
      %v291 = vld [vmem:[%s251 + $0x5c] sm:$0xf]
      %v292 = vld [vmem:[%s251 + $0x60] sm:$0xf]
      %v293 = vld [vmem:[%s251 + $0x64] sm:$0xf]
      %v294 = vld [vmem:[%s251 + $0x68] sm:$0xf]
      %v295 = vld [vmem:[%s251 + $0x6c] sm:$0xf]
      %v296 = vld [vmem:[%s251 + $0x70] sm:$0xf]
      %v297 = vld [vmem:[%s251 + $0x74] sm:$0xf]
      %v298 = vld [vmem:[%s251 + $0x78] sm:$0xf]
      %v299 = vld [vmem:[%s251 + $0x7c] sm:$0xf]
      %v300 = vld [vmem:[%s3] sm:$0xff]
      %v301 = vld [vmem:[%s3 + $0x8] sm:$0xff]
      %v334 = vunpack.c.l.b16 %v268
      %v335 = vunpack.c.l.b16 %v269
      %v336 = vunpack.c.l.b16 %v270
      %v337 = vunpack.c.l.b16 %v271
      %v338 = vunpack.c.l.b16 %v272
      %v339 = vunpack.c.l.b16 %v273
      %v340 = vunpack.c.l.b16 %v274
      %v341 = vunpack.c.l.b16 %v275
      %v342 = vunpack.c.l.b16 %v276
      %v343 = vunpack.c.l.b16 %v277
      %v344 = vunpack.c.l.b16 %v278
      %v345 = vunpack.c.l.b16 %v279
      %v346 = vunpack.c.l.b16 %v280
      %v347 = vunpack.c.l.b16 %v281
      %v348 = vunpack.c.l.b16 %v282
      %v349 = vunpack.c.l.b16 %v283
      %v350 = vunpack.c.l.b16 %v284
      %v351 = vunpack.c.l.b16 %v285
      %v352 = vunpack.c.l.b16 %v286
      %v353 = vunpack.c.l.b16 %v287
      %v354 = vunpack.c.l.b16 %v288
      %v355 = vunpack.c.l.b16 %v289
      %v356 = vunpack.c.l.b16 %v290
      %v357 = vunpack.c.l.b16 %v291
      %v358 = vunpack.c.l.b16 %v292
      %v359 = vunpack.c.l.b16 %v293
      %v360 = vunpack.c.l.b16 %v294
      %v361 = vunpack.c.l.b16 %v295
      %v362 = vunpack.c.l.b16 %v296
      %v363 = vunpack.c.l.b16 %v297
      %v364 = vunpack.c.l.b16 %v298
      %v365 = vunpack.c.l.b16 %v299
      %v366 = vpack.c.b16 %v335, %v334
      %v367 = vpack.c.b16 %v337, %v336
      %v368 = vpack.c.b16 %v339, %v338
      %v369 = vpack.c.b16 %v341, %v340
      %v370 = vpack.c.b16 %v343, %v342
      %v371 = vpack.c.b16 %v345, %v344
      %v372 = vpack.c.b16 %v347, %v346
      %v373 = vpack.c.b16 %v349, %v348
      %v374 = vpack.c.b16 %v351, %v350
      %v375 = vpack.c.b16 %v353, %v352
      %v376 = vpack.c.b16 %v355, %v354
      %v377 = vpack.c.b16 %v357, %v356
      %v378 = vpack.c.b16 %v359, %v358
      %v379 = vpack.c.b16 %v361, %v360
      %v380 = vpack.c.b16 %v363, %v362
      %v381 = vpack.c.b16 %v365, %v364
      %v384 = vunpack.c.l.b16 %v300
      %v385 = vunpack.c.h.b16 %v300
      %v386 = vunpack.c.l.b16 %v301
      %v387 = vunpack.c.h.b16 %v301
      %v388 = vpack.c.b16 %v386, %v384
      %v389 = vpack.c.b16 %v387, %v385
      %vm392 = vcmask 130048
      %v394 = vsel %vm392, %v366, 0
      %v397 = vsel %vm392, %v367, 0
      %v400 = vsel %vm392, %v368, 0
      %v403 = vsel %vm392, %v369, 0
      %v406 = vsel %vm392, %v370, 0
      %v409 = vsel %vm392, %v371, 0
      %v412 = vsel %vm392, %v372, 0
      %v415 = vsel %vm392, %v373, 0
      %v418 = vsel %vm392, %v374, 0
      %v421 = vsel %vm392, %v375, 0
      %v424 = vsel %vm392, %v376, 0
      %v427 = vsel %vm392, %v377, 0
      %v430 = vsel %vm392, %v378, 0
      %v433 = vsel %vm392, %v379, 0
      %v436 = vsel %vm392, %v380, 0
      %v439 = vsel %vm392, %v381, 0
      %441 = vmatprep.subr.bf16.mxu0 0
      %442 = vmatpush1.bf16.msra.mxu0 0
      %443 = vmatprep.subr.bf16.mxu0 0
      %444 = vmatpush1.bf16.msra.mxu0 0
      %445 = vmatprep.subr.bf16.mxu0 0
      %446 = vmatpush1.bf16.msra.mxu0 0
      %447 = vmatprep.subr.bf16.mxu0 0
      %448 = vmatpush1.bf16.msra.mxu0 0
      %449 = vmatprep.subr.bf16.mxu0 0
      %450 = vmatpush1.bf16.msra.mxu0 0
      %451 = vmatprep.subr.bf16.mxu0 0
      %452 = vmatpush1.bf16.msra.mxu0 0
      %453 = vmatprep.subr.bf16.mxu0 0
      %454 = vmatpush1.bf16.msra.mxu0 0
      %455 = vmatprep.subr.bf16.mxu0 %v389
      %456 = vmatpush1.bf16.msra.mxu0 %v388
      %457 = vmatprep.subr.bf16.mxu0 0
      %458 = vmatpush2.bf16.msra.mxu0 0
      %459 = vmatprep.subr.bf16.mxu0 0
      %460 = vmatpush2.bf16.msra.mxu0 0
      %461 = vmatprep.subr.bf16.mxu0 0
      %462 = vmatpush2.bf16.msra.mxu0 0
      %463 = vmatprep.subr.bf16.mxu0 0
      %464 = vmatpush2.bf16.msra.mxu0 0
      %465 = vmatprep.subr.bf16.mxu0 0
      %466 = vmatpush2.bf16.msra.mxu0 0
      %467 = vmatprep.subr.bf16.mxu0 0
      %468 = vmatpush2.bf16.msra.mxu0 0
      %469 = vmatprep.subr.bf16.mxu0 0
      %470 = vmatpush2.bf16.msra.mxu0 0
      %471 = vmatprep.subr.bf16.mxu0 0
      %472 = vmatpush2.bf16.msra.mxu0 0
      %473 = vmatprep.mubr.bf16.mxu0 0
      %474 = vmatmul.mubr.bf16.gmra.mxu0 %v394
      %v475 = vpop.f32.mrf.mxu0
      %v476 = vadd.f32 0.0, %v475
      %v477 = vpop.f32.mrf.mxu0
      %v478 = vadd.f32 0.0, %v477
      %v479 = vpop.f32.mrf.mxu0
      %v480 = vadd.f32 0.0, %v479
      %v481 = vpop.f32.mrf.mxu0
      %v482 = vadd.f32 0.0, %v481
      %483 = vmatprep.mubr.bf16.mxu0 0
      %484 = vmatmul.mubr.bf16.gmra.mxu0 %v397
      %v485 = vpop.f32.mrf.mxu0
      %v486 = vadd.f32 0.0, %v485
      %v487 = vpop.f32.mrf.mxu0
      %v488 = vadd.f32 0.0, %v487
      %v489 = vpop.f32.mrf.mxu0
      %v490 = vadd.f32 0.0, %v489
      %v491 = vpop.f32.mrf.mxu0
      %v492 = vadd.f32 0.0, %v491
      %493 = vmatprep.mubr.bf16.mxu0 0
      %494 = vmatmul.mubr.bf16.gmra.mxu0 %v400
      %v495 = vpop.f32.mrf.mxu0
      %v496 = vadd.f32 0.0, %v495
      %v497 = vpop.f32.mrf.mxu0
      %v498 = vadd.f32 0.0, %v497
      %v499 = vpop.f32.mrf.mxu0
      %v500 = vadd.f32 0.0, %v499
      %v501 = vpop.f32.mrf.mxu0
      %v502 = vadd.f32 0.0, %v501
      %503 = vmatprep.mubr.bf16.mxu0 0
      %504 = vmatmul.mubr.bf16.gmra.mxu0 %v403
      %v505 = vpop.f32.mrf.mxu0
      %v506 = vadd.f32 0.0, %v505
      %v507 = vpop.f32.mrf.mxu0
      %v508 = vadd.f32 0.0, %v507
      %v509 = vpop.f32.mrf.mxu0
      %v510 = vadd.f32 0.0, %v509
      %v511 = vpop.f32.mrf.mxu0
      %v512 = vadd.f32 0.0, %v511
      %513 = vmatprep.mubr.bf16.mxu0 0
      %514 = vmatmul.mubr.bf16.gmra.mxu0 %v406
      %v515 = vpop.f32.mrf.mxu0
      %v516 = vadd.f32 0.0, %v515
      %v517 = vpop.f32.mrf.mxu0
      %v518 = vadd.f32 0.0, %v517
      %v519 = vpop.f32.mrf.mxu0
      %v520 = vadd.f32 0.0, %v519
      %v521 = vpop.f32.mrf.mxu0
      %v522 = vadd.f32 0.0, %v521
      %523 = vmatprep.mubr.bf16.mxu0 0
      %524 = vmatmul.mubr.bf16.gmra.mxu0 %v409
      %v525 = vpop.f32.mrf.mxu0
      %v526 = vadd.f32 0.0, %v525
      %v527 = vpop.f32.mrf.mxu0
      %v528 = vadd.f32 0.0, %v527
      %v529 = vpop.f32.mrf.mxu0
      %v530 = vadd.f32 0.0, %v529
      %v531 = vpop.f32.mrf.mxu0
      %v532 = vadd.f32 0.0, %v531
      %533 = vmatprep.mubr.bf16.mxu0 0
      %534 = vmatmul.mubr.bf16.gmra.mxu0 %v412
      %v535 = vpop.f32.mrf.mxu0
      %v536 = vadd.f32 0.0, %v535
      %v537 = vpop.f32.mrf.mxu0
      %v538 = vadd.f32 0.0, %v537
      %v539 = vpop.f32.mrf.mxu0
      %v540 = vadd.f32 0.0, %v539
      %v541 = vpop.f32.mrf.mxu0
      %v542 = vadd.f32 0.0, %v541
      %543 = vmatprep.mubr.bf16.mxu0 0
      %544 = vmatmul.mubr.bf16.gmra.mxu0 %v415
      %v545 = vpop.f32.mrf.mxu0
      %v546 = vadd.f32 0.0, %v545
      %v547 = vpop.f32.mrf.mxu0
      %v548 = vadd.f32 0.0, %v547
      %v549 = vpop.f32.mrf.mxu0
      %v550 = vadd.f32 0.0, %v549
      %v551 = vpop.f32.mrf.mxu0
      %v552 = vadd.f32 0.0, %v551
      %553 = vmatprep.mubr.bf16.mxu0 0
      %554 = vmatmul.mubr.bf16.gmra.mxu0 %v418
      %v555 = vpop.f32.mrf.mxu0
      %v556 = vadd.f32 0.0, %v555
      %v557 = vpop.f32.mrf.mxu0
      %v558 = vadd.f32 0.0, %v557
      %v559 = vpop.f32.mrf.mxu0
      %v560 = vadd.f32 0.0, %v559
      %v561 = vpop.f32.mrf.mxu0
      %v562 = vadd.f32 0.0, %v561
      %563 = vmatprep.mubr.bf16.mxu0 0
      %564 = vmatmul.mubr.bf16.gmra.mxu0 %v421
      %v565 = vpop.f32.mrf.mxu0
      %v566 = vadd.f32 0.0, %v565
      %v567 = vpop.f32.mrf.mxu0
      %v568 = vadd.f32 0.0, %v567
      %v569 = vpop.f32.mrf.mxu0
      %v570 = vadd.f32 0.0, %v569
      %v571 = vpop.f32.mrf.mxu0
      %v572 = vadd.f32 0.0, %v571
      %573 = vmatprep.mubr.bf16.mxu0 0
      %574 = vmatmul.mubr.bf16.gmra.mxu0 %v424
      %v575 = vpop.f32.mrf.mxu0
      %v576 = vadd.f32 0.0, %v575
      %v577 = vpop.f32.mrf.mxu0
      %v578 = vadd.f32 0.0, %v577
      %v579 = vpop.f32.mrf.mxu0
      %v580 = vadd.f32 0.0, %v579
      %v581 = vpop.f32.mrf.mxu0
      %v582 = vadd.f32 0.0, %v581
      %583 = vmatprep.mubr.bf16.mxu0 0
      %584 = vmatmul.mubr.bf16.gmra.mxu0 %v427
      %v585 = vpop.f32.mrf.mxu0
      %v586 = vadd.f32 0.0, %v585
      %v587 = vpop.f32.mrf.mxu0
      %v588 = vadd.f32 0.0, %v587
      %v589 = vpop.f32.mrf.mxu0
      %v590 = vadd.f32 0.0, %v589
      %v591 = vpop.f32.mrf.mxu0
      %v592 = vadd.f32 0.0, %v591
      %593 = vmatprep.mubr.bf16.mxu0 0
      %594 = vmatmul.mubr.bf16.gmra.mxu0 %v430
      %v595 = vpop.f32.mrf.mxu0
      %v596 = vadd.f32 0.0, %v595
      %v597 = vpop.f32.mrf.mxu0
      %v598 = vadd.f32 0.0, %v597
      %v599 = vpop.f32.mrf.mxu0
      %v600 = vadd.f32 0.0, %v599
      %v601 = vpop.f32.mrf.mxu0
      %v602 = vadd.f32 0.0, %v601
      %603 = vmatprep.mubr.bf16.mxu0 0
      %604 = vmatmul.mubr.bf16.gmra.mxu0 %v433
      %v605 = vpop.f32.mrf.mxu0
      %v606 = vadd.f32 0.0, %v605
      %v607 = vpop.f32.mrf.mxu0
      %v608 = vadd.f32 0.0, %v607
      %v609 = vpop.f32.mrf.mxu0
      %v610 = vadd.f32 0.0, %v609
      %v611 = vpop.f32.mrf.mxu0
      %v612 = vadd.f32 0.0, %v611
      %613 = vmatprep.mubr.bf16.mxu0 0
      %614 = vmatmul.mubr.bf16.gmra.mxu0 %v436
      %v615 = vpop.f32.mrf.mxu0
      %v616 = vadd.f32 0.0, %v615
      %v617 = vpop.f32.mrf.mxu0
      %v618 = vadd.f32 0.0, %v617
      %v619 = vpop.f32.mrf.mxu0
      %v620 = vadd.f32 0.0, %v619
      %v621 = vpop.f32.mrf.mxu0
      %v622 = vadd.f32 0.0, %v621
      %623 = vmatprep.mubr.bf16.mxu0 0
      %624 = vmatmul.mubr.bf16.gmra.mxu0 %v439
      %v625 = vpop.f32.mrf.mxu0
      %v626 = vadd.f32 0.0, %v625
      %v627 = vpop.f32.mrf.mxu0
      %v628 = vadd.f32 0.0, %v627
      %v629 = vpop.f32.mrf.mxu0
      %v630 = vadd.f32 0.0, %v629
      %v631 = vpop.f32.mrf.mxu0
      %v632 = vadd.f32 0.0, %v631
      %633 = vdwg.mxu0
      %v634 = vpack.c.bf16 %v480, %v476
      %v635 = vpack.c.bf16 %v482, %v478
      %v636 = vpack.c.bf16 %v490, %v486
      %v637 = vpack.c.bf16 %v492, %v488
      %v638 = vpack.c.bf16 %v500, %v496
      %v639 = vpack.c.bf16 %v502, %v498
      %v640 = vpack.c.bf16 %v510, %v506
      %v641 = vpack.c.bf16 %v512, %v508
      %v642 = vpack.c.bf16 %v520, %v516
      %v643 = vpack.c.bf16 %v522, %v518
      %v644 = vpack.c.bf16 %v530, %v526
      %v645 = vpack.c.bf16 %v532, %v528
      %v646 = vpack.c.bf16 %v540, %v536
      %v647 = vpack.c.bf16 %v542, %v538
      %v648 = vpack.c.bf16 %v550, %v546
      %v649 = vpack.c.bf16 %v552, %v548
      %v650 = vpack.c.bf16 %v560, %v556
      %v651 = vpack.c.bf16 %v562, %v558
      %v652 = vpack.c.bf16 %v570, %v566
      %v653 = vpack.c.bf16 %v572, %v568
      %v654 = vpack.c.bf16 %v580, %v576
      %v655 = vpack.c.bf16 %v582, %v578
      %v656 = vpack.c.bf16 %v590, %v586
      %v657 = vpack.c.bf16 %v592, %v588
      %v658 = vpack.c.bf16 %v600, %v596
      %v659 = vpack.c.bf16 %v602, %v598
      %v660 = vpack.c.bf16 %v610, %v606
      %v661 = vpack.c.bf16 %v612, %v608
      %v662 = vpack.c.bf16 %v620, %v616
      %v663 = vpack.c.bf16 %v622, %v618
      %v664 = vpack.c.bf16 %v630, %v626
      %v665 = vpack.c.bf16 %v632, %v628
      %v666 = vld [vmem:[%s245] sm:$0xff]
      %v667 = vld [vmem:[%s245 + $0x8] sm:$0xff]
      %v668 = vld [vmem:[%s245 + $0x10] sm:$0xff]
      %v669 = vld [vmem:[%s245 + $0x18] sm:$0xff]
      %v670 = vld [vmem:[%s245 + $0x20] sm:$0xff]
      %v671 = vld [vmem:[%s245 + $0x28] sm:$0xff]
      %v672 = vld [vmem:[%s245 + $0x30] sm:$0xff]
      %v673 = vld [vmem:[%s245 + $0x38] sm:$0xff]
      %v674 = vld [vmem:[%s245 + $0x40] sm:$0xff]
      %v675 = vld [vmem:[%s245 + $0x48] sm:$0xff]
      %v676 = vld [vmem:[%s245 + $0x50] sm:$0xff]
      %v677 = vld [vmem:[%s245 + $0x58] sm:$0xff]
      %v678 = vld [vmem:[%s245 + $0x60] sm:$0xff]
      %v679 = vld [vmem:[%s245 + $0x68] sm:$0xff]
      %v680 = vld [vmem:[%s245 + $0x70] sm:$0xff]
      %v681 = vld [vmem:[%s245 + $0x78] sm:$0xff]
      %v682 = vld [vmem:[%s245 + $0x80] sm:$0xff]
      %v683 = vld [vmem:[%s245 + $0x88] sm:$0xff]
      %v684 = vld [vmem:[%s245 + $0x90] sm:$0xff]
      %v685 = vld [vmem:[%s245 + $0x98] sm:$0xff]
      %v686 = vld [vmem:[%s245 + $0xa0] sm:$0xff]
      %v687 = vld [vmem:[%s245 + $0xa8] sm:$0xff]
      %v688 = vld [vmem:[%s245 + $0xb0] sm:$0xff]
      %v689 = vld [vmem:[%s245 + $0xb8] sm:$0xff]
      %v690 = vld [vmem:[%s245 + $0xc0] sm:$0xff]
      %v691 = vld [vmem:[%s245 + $0xc8] sm:$0xff]
      %v692 = vld [vmem:[%s245 + $0xd0] sm:$0xff]
      %v693 = vld [vmem:[%s245 + $0xd8] sm:$0xff]
      %v694 = vld [vmem:[%s245 + $0xe0] sm:$0xff]
      %v695 = vld [vmem:[%s245 + $0xe8] sm:$0xff]
      %v696 = vld [vmem:[%s245 + $0xf0] sm:$0xff]
      %v697 = vld [vmem:[%s245 + $0xf8] sm:$0xff]
      %v730 = vunpack.c.l.b16 %v634
      %v731 = vunpack.c.l.b16 %v635
      %v732 = vunpack.c.h.b16 %v634
      %v733 = vunpack.c.h.b16 %v635
      %v734 = vunpack.c.l.b16 %v636
      %v735 = vunpack.c.l.b16 %v637
      %v736 = vunpack.c.h.b16 %v636
      %v737 = vunpack.c.h.b16 %v637
      %v738 = vunpack.c.l.b16 %v638
      %v739 = vunpack.c.l.b16 %v639
      %v740 = vunpack.c.h.b16 %v638
      %v741 = vunpack.c.h.b16 %v639
      %v742 = vunpack.c.l.b16 %v640
      %v743 = vunpack.c.l.b16 %v641
      %v744 = vunpack.c.h.b16 %v640
      %v745 = vunpack.c.h.b16 %v641
      %v746 = vunpack.c.l.b16 %v642
      %v747 = vunpack.c.l.b16 %v643
      %v748 = vunpack.c.h.b16 %v642
      %v749 = vunpack.c.h.b16 %v643
      %v750 = vunpack.c.l.b16 %v644
      %v751 = vunpack.c.l.b16 %v645
      %v752 = vunpack.c.h.b16 %v644
      %v753 = vunpack.c.h.b16 %v645
      %v754 = vunpack.c.l.b16 %v646
      %v755 = vunpack.c.l.b16 %v647
      %v756 = vunpack.c.h.b16 %v646
      %v757 = vunpack.c.h.b16 %v647
      %v758 = vunpack.c.l.b16 %v648
      %v759 = vunpack.c.l.b16 %v649
      %v760 = vunpack.c.h.b16 %v648
      %v761 = vunpack.c.h.b16 %v649
      %v762 = vunpack.c.l.b16 %v650
      %v763 = vunpack.c.l.b16 %v651
      %v764 = vunpack.c.h.b16 %v650
      %v765 = vunpack.c.h.b16 %v651
      %v766 = vunpack.c.l.b16 %v652
      %v767 = vunpack.c.l.b16 %v653
      %v768 = vunpack.c.h.b16 %v652
      %v769 = vunpack.c.h.b16 %v653
      %v770 = vunpack.c.l.b16 %v654
      %v771 = vunpack.c.l.b16 %v655
      %v772 = vunpack.c.h.b16 %v654
      %v773 = vunpack.c.h.b16 %v655
      %v774 = vunpack.c.l.b16 %v656
      %v775 = vunpack.c.l.b16 %v657
      %v776 = vunpack.c.h.b16 %v656
      %v777 = vunpack.c.h.b16 %v657
      %v778 = vunpack.c.l.b16 %v658
      %v779 = vunpack.c.l.b16 %v659
      %v780 = vunpack.c.h.b16 %v658
      %v781 = vunpack.c.h.b16 %v659
      %v782 = vunpack.c.l.b16 %v660
      %v783 = vunpack.c.l.b16 %v661
      %v784 = vunpack.c.h.b16 %v660
      %v785 = vunpack.c.h.b16 %v661
      %v786 = vunpack.c.l.b16 %v662
      %v787 = vunpack.c.l.b16 %v663
      %v788 = vunpack.c.h.b16 %v662
      %v789 = vunpack.c.h.b16 %v663
      %v790 = vunpack.c.l.b16 %v664
      %v791 = vunpack.c.l.b16 %v665
      %v792 = vunpack.c.h.b16 %v664
      %v793 = vunpack.c.h.b16 %v665
      %v794 = vpack.c.b16 %v731, %v730
      %v795 = vpack.c.b16 %v733, %v732
      %v796 = vpack.c.b16 %v735, %v734
      %v797 = vpack.c.b16 %v737, %v736
      %v798 = vpack.c.b16 %v739, %v738
      %v799 = vpack.c.b16 %v741, %v740
      %v800 = vpack.c.b16 %v743, %v742
      %v801 = vpack.c.b16 %v745, %v744
      %v802 = vpack.c.b16 %v747, %v746
      %v803 = vpack.c.b16 %v749, %v748
      %v804 = vpack.c.b16 %v751, %v750
      %v805 = vpack.c.b16 %v753, %v752
      %v806 = vpack.c.b16 %v755, %v754
      %v807 = vpack.c.b16 %v757, %v756
      %v808 = vpack.c.b16 %v759, %v758
      %v809 = vpack.c.b16 %v761, %v760
      %v810 = vpack.c.b16 %v763, %v762
      %v811 = vpack.c.b16 %v765, %v764
      %v812 = vpack.c.b16 %v767, %v766
      %v813 = vpack.c.b16 %v769, %v768
      %v814 = vpack.c.b16 %v771, %v770
      %v815 = vpack.c.b16 %v773, %v772
      %v816 = vpack.c.b16 %v775, %v774
      %v817 = vpack.c.b16 %v777, %v776
      %v818 = vpack.c.b16 %v779, %v778
      %v819 = vpack.c.b16 %v781, %v780
      %v820 = vpack.c.b16 %v783, %v782
      %v821 = vpack.c.b16 %v785, %v784
      %v822 = vpack.c.b16 %v787, %v786
      %v823 = vpack.c.b16 %v789, %v788
      %v824 = vpack.c.b16 %v791, %v790
      %v825 = vpack.c.b16 %v793, %v792
      %v858 = vmul.bf16 %v666, %v794
      %v859 = vmul.bf16 %v667, %v795
      %v860 = vmul.bf16 %v668, %v796
      %v861 = vmul.bf16 %v669, %v797
      %v862 = vmul.bf16 %v670, %v798
      %v863 = vmul.bf16 %v671, %v799
      %v864 = vmul.bf16 %v672, %v800
      %v865 = vmul.bf16 %v673, %v801
      %v866 = vmul.bf16 %v674, %v802
      %v867 = vmul.bf16 %v675, %v803
      %v868 = vmul.bf16 %v676, %v804
      %v869 = vmul.bf16 %v677, %v805
      %v870 = vmul.bf16 %v678, %v806
      %v871 = vmul.bf16 %v679, %v807
      %v872 = vmul.bf16 %v680, %v808
      %v873 = vmul.bf16 %v681, %v809
      %v874 = vmul.bf16 %v682, %v810
      %v875 = vmul.bf16 %v683, %v811
      %v876 = vmul.bf16 %v684, %v812
      %v877 = vmul.bf16 %v685, %v813
      %v878 = vmul.bf16 %v686, %v814
      %v879 = vmul.bf16 %v687, %v815
      %v880 = vmul.bf16 %v688, %v816
      %v881 = vmul.bf16 %v689, %v817
      %v882 = vmul.bf16 %v690, %v818
      %v883 = vmul.bf16 %v691, %v819
      %v884 = vmul.bf16 %v692, %v820
      %v885 = vmul.bf16 %v693, %v821
      %v886 = vmul.bf16 %v694, %v822
      %v887 = vmul.bf16 %v695, %v823
      %v888 = vmul.bf16 %v696, %v824
      %v889 = vmul.bf16 %v697, %v825
      %v890 = vld [vmem:[%s4] sm:$0xf]
      %v891 = vld [vmem:[%s4 + $0x4] sm:$0xf]
      %v892 = vld [vmem:[%s4 + $0x8] sm:$0xf]
      %v893 = vld [vmem:[%s4 + $0xc] sm:$0xf]
      %v894 = vld [vmem:[%s4 + $0x10] sm:$0xf]
      %v895 = vld [vmem:[%s4 + $0x14] sm:$0xf]
      %v896 = vld [vmem:[%s4 + $0x18] sm:$0xf]
      %v897 = vld [vmem:[%s4 + $0x1c] sm:$0xf]
      %v898 = vld [vmem:[%s4 + $0x20] sm:$0xf]
      %v899 = vld [vmem:[%s4 + $0x24] sm:$0xf]
      %v900 = vld [vmem:[%s4 + $0x28] sm:$0xf]
      %v901 = vld [vmem:[%s4 + $0x2c] sm:$0xf]
      %v902 = vld [vmem:[%s4 + $0x30] sm:$0xf]
      %v903 = vld [vmem:[%s4 + $0x34] sm:$0xf]
      %v904 = vld [vmem:[%s4 + $0x38] sm:$0xf]
      %v905 = vld [vmem:[%s4 + $0x3c] sm:$0xf]
      %v906 = vld [vmem:[%s4 + $0x40] sm:$0xf]
      %v907 = vld [vmem:[%s4 + $0x44] sm:$0xf]
      %v908 = vld [vmem:[%s4 + $0x48] sm:$0xf]
      %v909 = vld [vmem:[%s4 + $0x4c] sm:$0xf]
      %v910 = vld [vmem:[%s4 + $0x50] sm:$0xf]
      %v911 = vld [vmem:[%s4 + $0x54] sm:$0xf]
      %v912 = vld [vmem:[%s4 + $0x58] sm:$0xf]
      %v913 = vld [vmem:[%s4 + $0x5c] sm:$0xf]
      %v914 = vld [vmem:[%s4 + $0x60] sm:$0xf]
      %v915 = vld [vmem:[%s4 + $0x64] sm:$0xf]
      %v916 = vld [vmem:[%s4 + $0x68] sm:$0xf]
      %v917 = vld [vmem:[%s4 + $0x6c] sm:$0xf]
      %v918 = vld [vmem:[%s4 + $0x70] sm:$0xf]
      %v919 = vld [vmem:[%s4 + $0x74] sm:$0xf]
      %v920 = vld [vmem:[%s4 + $0x78] sm:$0xf]
      %v921 = vld [vmem:[%s4 + $0x7c] sm:$0xf]
      %v954 = vunpack.c.l.b16 %v858
      %v955 = vunpack.c.h.b16 %v858
      %v956 = vunpack.c.l.b16 %v859
      %v957 = vunpack.c.h.b16 %v859
      %v958 = vunpack.c.l.b16 %v860
      %v959 = vunpack.c.h.b16 %v860
      %v960 = vunpack.c.l.b16 %v861
      %v961 = vunpack.c.h.b16 %v861
      %v962 = vunpack.c.l.b16 %v862
      %v963 = vunpack.c.h.b16 %v862
      %v964 = vunpack.c.l.b16 %v863
      %v965 = vunpack.c.h.b16 %v863
      %v966 = vunpack.c.l.b16 %v864
      %v967 = vunpack.c.h.b16 %v864
      %v968 = vunpack.c.l.b16 %v865
      %v969 = vunpack.c.h.b16 %v865
      %v970 = vunpack.c.l.b16 %v866
      %v971 = vunpack.c.h.b16 %v866
      %v972 = vunpack.c.l.b16 %v867
      %v973 = vunpack.c.h.b16 %v867
      %v974 = vunpack.c.l.b16 %v868
      %v975 = vunpack.c.h.b16 %v868
      %v976 = vunpack.c.l.b16 %v869
      %v977 = vunpack.c.h.b16 %v869
      %v978 = vunpack.c.l.b16 %v870
      %v979 = vunpack.c.h.b16 %v870
      %v980 = vunpack.c.l.b16 %v871
      %v981 = vunpack.c.h.b16 %v871
      %v982 = vunpack.c.l.b16 %v872
      %v983 = vunpack.c.h.b16 %v872
      %v984 = vunpack.c.l.b16 %v873
      %v985 = vunpack.c.h.b16 %v873
      %v986 = vunpack.c.l.b16 %v874
      %v987 = vunpack.c.h.b16 %v874
      %v988 = vunpack.c.l.b16 %v875
      %v989 = vunpack.c.h.b16 %v875
      %v990 = vunpack.c.l.b16 %v876
      %v991 = vunpack.c.h.b16 %v876
      %v992 = vunpack.c.l.b16 %v877
      %v993 = vunpack.c.h.b16 %v877
      %v994 = vunpack.c.l.b16 %v878
      %v995 = vunpack.c.h.b16 %v878
      %v996 = vunpack.c.l.b16 %v879
      %v997 = vunpack.c.h.b16 %v879
      %v998 = vunpack.c.l.b16 %v880
      %v999 = vunpack.c.h.b16 %v880
      %v1000 = vunpack.c.l.b16 %v881
      %v1001 = vunpack.c.h.b16 %v881
      %v1002 = vunpack.c.l.b16 %v882
      %v1003 = vunpack.c.h.b16 %v882
      %v1004 = vunpack.c.l.b16 %v883
      %v1005 = vunpack.c.h.b16 %v883
      %v1006 = vunpack.c.l.b16 %v884
      %v1007 = vunpack.c.h.b16 %v884
      %v1008 = vunpack.c.l.b16 %v885
      %v1009 = vunpack.c.h.b16 %v885
      %v1010 = vunpack.c.l.b16 %v886
      %v1011 = vunpack.c.h.b16 %v886
      %v1012 = vunpack.c.l.b16 %v887
      %v1013 = vunpack.c.h.b16 %v887
      %v1014 = vunpack.c.l.b16 %v888
      %v1015 = vunpack.c.h.b16 %v888
      %v1016 = vunpack.c.l.b16 %v889
      %v1017 = vunpack.c.h.b16 %v889
      %v1018 = vpack.c.b16 %v956, %v954
      %v1019 = vpack.c.b16 %v957, %v955
      %v1020 = vpack.c.b16 %v960, %v958
      %v1021 = vpack.c.b16 %v961, %v959
      %v1022 = vpack.c.b16 %v964, %v962
      %v1023 = vpack.c.b16 %v965, %v963
      %v1024 = vpack.c.b16 %v968, %v966
      %v1025 = vpack.c.b16 %v969, %v967
      %v1026 = vpack.c.b16 %v972, %v970
      %v1027 = vpack.c.b16 %v973, %v971
      %v1028 = vpack.c.b16 %v976, %v974
      %v1029 = vpack.c.b16 %v977, %v975
      %v1030 = vpack.c.b16 %v980, %v978
      %v1031 = vpack.c.b16 %v981, %v979
      %v1032 = vpack.c.b16 %v984, %v982
      %v1033 = vpack.c.b16 %v985, %v983
      %v1034 = vpack.c.b16 %v988, %v986
      %v1035 = vpack.c.b16 %v989, %v987
      %v1036 = vpack.c.b16 %v992, %v990
      %v1037 = vpack.c.b16 %v993, %v991
      %v1038 = vpack.c.b16 %v996, %v994
      %v1039 = vpack.c.b16 %v997, %v995
      %v1040 = vpack.c.b16 %v1000, %v998
      %v1041 = vpack.c.b16 %v1001, %v999
      %v1042 = vpack.c.b16 %v1004, %v1002
      %v1043 = vpack.c.b16 %v1005, %v1003
      %v1044 = vpack.c.b16 %v1008, %v1006
      %v1045 = vpack.c.b16 %v1009, %v1007
      %v1046 = vpack.c.b16 %v1012, %v1010
      %v1047 = vpack.c.b16 %v1013, %v1011
      %v1048 = vpack.c.b16 %v1016, %v1014
      %v1049 = vpack.c.b16 %v1017, %v1015
      %v1114 = vunpack.c.l.b16 %v890
      %v1115 = vunpack.c.l.b16 %v891
      %v1116 = vunpack.c.l.b16 %v892
      %v1117 = vunpack.c.l.b16 %v893
      %v1118 = vunpack.c.l.b16 %v894
      %v1119 = vunpack.c.l.b16 %v895
      %v1120 = vunpack.c.l.b16 %v896
      %v1121 = vunpack.c.l.b16 %v897
      %v1122 = vunpack.c.l.b16 %v898
      %v1123 = vunpack.c.l.b16 %v899
      %v1124 = vunpack.c.l.b16 %v900
      %v1125 = vunpack.c.l.b16 %v901
      %v1126 = vunpack.c.l.b16 %v902
      %v1127 = vunpack.c.l.b16 %v903
      %v1128 = vunpack.c.l.b16 %v904
      %v1129 = vunpack.c.l.b16 %v905
      %v1130 = vunpack.c.l.b16 %v906
      %v1131 = vunpack.c.l.b16 %v907
      %v1132 = vunpack.c.l.b16 %v908
      %v1133 = vunpack.c.l.b16 %v909
      %v1134 = vunpack.c.l.b16 %v910
      %v1135 = vunpack.c.l.b16 %v911
      %v1136 = vunpack.c.l.b16 %v912
      %v1137 = vunpack.c.l.b16 %v913
      %v1138 = vunpack.c.l.b16 %v914
      %v1139 = vunpack.c.l.b16 %v915
      %v1140 = vunpack.c.l.b16 %v916
      %v1141 = vunpack.c.l.b16 %v917
      %v1142 = vunpack.c.l.b16 %v918
      %v1143 = vunpack.c.l.b16 %v919
      %v1144 = vunpack.c.l.b16 %v920
      %v1145 = vunpack.c.l.b16 %v921
      %v1146 = vpack.c.b16 %v1115, %v1114
      %v1147 = vpack.c.b16 %v1117, %v1116
      %v1148 = vpack.c.b16 %v1119, %v1118
      %v1149 = vpack.c.b16 %v1121, %v1120
      %v1150 = vpack.c.b16 %v1123, %v1122
      %v1151 = vpack.c.b16 %v1125, %v1124
      %v1152 = vpack.c.b16 %v1127, %v1126
      %v1153 = vpack.c.b16 %v1129, %v1128
      %v1154 = vpack.c.b16 %v1131, %v1130
      %v1155 = vpack.c.b16 %v1133, %v1132
      %v1156 = vpack.c.b16 %v1135, %v1134
      %v1157 = vpack.c.b16 %v1137, %v1136
      %v1158 = vpack.c.b16 %v1139, %v1138
      %v1159 = vpack.c.b16 %v1141, %v1140
      %v1160 = vpack.c.b16 %v1143, %v1142
      %v1161 = vpack.c.b16 %v1145, %v1144
      %1178 = vmatprep.subr.bf16.mxu0 0
      %1179 = vmatpush1.bf16.msra.mxu0 %v1153
      %1180 = vmatprep.subr.bf16.mxu0 0
      %1181 = vmatpush1.bf16.msra.mxu0 %v1152
      %1182 = vmatprep.subr.bf16.mxu0 0
      %1183 = vmatpush1.bf16.msra.mxu0 %v1151
      %1184 = vmatprep.subr.bf16.mxu0 0
      %1185 = vmatpush1.bf16.msra.mxu0 %v1150
      %1186 = vmatprep.subr.bf16.mxu0 0
      %1187 = vmatpush1.bf16.msra.mxu0 %v1149
      %1188 = vmatprep.subr.bf16.mxu0 0
      %1189 = vmatpush1.bf16.msra.mxu0 %v1148
      %1190 = vmatprep.subr.bf16.mxu0 0
      %1191 = vmatpush1.bf16.msra.mxu0 %v1147
      %1192 = vmatprep.subr.bf16.mxu0 0
      %1193 = vmatpush1.bf16.msra.mxu0 %v1146
      %1194 = vmatprep.subr.bf16.mxu0 0
      %1195 = vmatpush2.bf16.msra.mxu0 %v1161
      %1196 = vmatprep.subr.bf16.mxu0 0
      %1197 = vmatpush2.bf16.msra.mxu0 %v1160
      %1198 = vmatprep.subr.bf16.mxu0 0
      %1199 = vmatpush2.bf16.msra.mxu0 %v1159
      %1200 = vmatprep.subr.bf16.mxu0 0
      %1201 = vmatpush2.bf16.msra.mxu0 %v1158
      %1202 = vmatprep.subr.bf16.mxu0 0
      %1203 = vmatpush2.bf16.msra.mxu0 %v1157
      %1204 = vmatprep.subr.bf16.mxu0 0
      %1205 = vmatpush2.bf16.msra.mxu0 %v1156
      %1206 = vmatprep.subr.bf16.mxu0 0
      %1207 = vmatpush2.bf16.msra.mxu0 %v1155
      %1208 = vmatprep.subr.bf16.mxu0 0
      %1209 = vmatpush2.bf16.msra.mxu0 %v1154
      %1210 = vmatprep.mubr.bf16.mxu0 %v1019
      %1211 = vmatmul.mubr.bf16.gmra.mxu0 %v1018
      %v1212 = vpop.f32.mrf.mxu0
      %v1213 = vadd.f32 0.0, %v1212
      %v1214 = vpop.f32.mrf.mxu0
      %v1215 = vpop.f32.mrf.mxu0
      %v1216 = vadd.f32 0.0, %v1215
      %v1217 = vpop.f32.mrf.mxu0
      %1218 = vmatprep.mubr.bf16.mxu0 %v1021
      %1219 = vmatmul.mubr.bf16.gmra.mxu0 %v1020
      %v1220 = vpop.f32.mrf.mxu0
      %v1221 = vadd.f32 0.0, %v1220
      %v1222 = vpop.f32.mrf.mxu0
      %v1223 = vpop.f32.mrf.mxu0
      %v1224 = vadd.f32 0.0, %v1223
      %v1225 = vpop.f32.mrf.mxu0
      %1226 = vmatprep.mubr.bf16.mxu0 %v1023
      %1227 = vmatmul.mubr.bf16.gmra.mxu0 %v1022
      %v1228 = vpop.f32.mrf.mxu0
      %v1229 = vadd.f32 0.0, %v1228
      %v1230 = vpop.f32.mrf.mxu0
      %v1231 = vpop.f32.mrf.mxu0
      %v1232 = vadd.f32 0.0, %v1231
      %v1233 = vpop.f32.mrf.mxu0
      %1234 = vmatprep.mubr.bf16.mxu0 %v1025
      %1235 = vmatmul.mubr.bf16.gmra.mxu0 %v1024
      %v1236 = vpop.f32.mrf.mxu0
      %v1237 = vadd.f32 0.0, %v1236
      %v1238 = vpop.f32.mrf.mxu0
      %v1239 = vpop.f32.mrf.mxu0
      %v1240 = vadd.f32 0.0, %v1239
      %v1241 = vpop.f32.mrf.mxu0
      %1242 = vmatprep.mubr.bf16.mxu0 %v1027
      %1243 = vmatmul.mubr.bf16.gmra.mxu0 %v1026
      %v1244 = vpop.f32.mrf.mxu0
      %v1245 = vadd.f32 0.0, %v1244
      %v1246 = vpop.f32.mrf.mxu0
      %v1247 = vpop.f32.mrf.mxu0
      %v1248 = vadd.f32 0.0, %v1247
      %v1249 = vpop.f32.mrf.mxu0
      %1250 = vmatprep.mubr.bf16.mxu0 %v1029
      %1251 = vmatmul.mubr.bf16.gmra.mxu0 %v1028
      %v1252 = vpop.f32.mrf.mxu0
      %v1253 = vadd.f32 0.0, %v1252
      %v1254 = vpop.f32.mrf.mxu0
      %v1255 = vpop.f32.mrf.mxu0
      %v1256 = vadd.f32 0.0, %v1255
      %v1257 = vpop.f32.mrf.mxu0
      %1258 = vmatprep.mubr.bf16.mxu0 %v1031
      %1259 = vmatmul.mubr.bf16.gmra.mxu0 %v1030
      %v1260 = vpop.f32.mrf.mxu0
      %v1261 = vadd.f32 0.0, %v1260
      %v1262 = vpop.f32.mrf.mxu0
      %v1263 = vpop.f32.mrf.mxu0
      %v1264 = vadd.f32 0.0, %v1263
      %v1265 = vpop.f32.mrf.mxu0
      %1266 = vmatprep.mubr.bf16.mxu0 %v1033
      %1267 = vmatmul.mubr.bf16.gmra.mxu0 %v1032
      %v1268 = vpop.f32.mrf.mxu0
      %v1269 = vadd.f32 0.0, %v1268
      %v1270 = vpop.f32.mrf.mxu0
      %v1271 = vpop.f32.mrf.mxu0
      %v1272 = vadd.f32 0.0, %v1271
      %v1273 = vpop.f32.mrf.mxu0
      %1274 = vmatprep.mubr.bf16.mxu0 %v1035
      %1275 = vmatmul.mubr.bf16.gmra.mxu0 %v1034
      %v1276 = vpop.f32.mrf.mxu0
      %v1277 = vadd.f32 0.0, %v1276
      %v1278 = vpop.f32.mrf.mxu0
      %v1279 = vpop.f32.mrf.mxu0
      %v1280 = vadd.f32 0.0, %v1279
      %v1281 = vpop.f32.mrf.mxu0
      %1282 = vmatprep.mubr.bf16.mxu0 %v1037
      %1283 = vmatmul.mubr.bf16.gmra.mxu0 %v1036
      %v1284 = vpop.f32.mrf.mxu0
      %v1285 = vadd.f32 0.0, %v1284
      %v1286 = vpop.f32.mrf.mxu0
      %v1287 = vpop.f32.mrf.mxu0
      %v1288 = vadd.f32 0.0, %v1287
      %v1289 = vpop.f32.mrf.mxu0
      %1290 = vmatprep.mubr.bf16.mxu0 %v1039
      %1291 = vmatmul.mubr.bf16.gmra.mxu0 %v1038
      %v1292 = vpop.f32.mrf.mxu0
      %v1293 = vadd.f32 0.0, %v1292
      %v1294 = vpop.f32.mrf.mxu0
      %v1295 = vpop.f32.mrf.mxu0
      %v1296 = vadd.f32 0.0, %v1295
      %v1297 = vpop.f32.mrf.mxu0
      %1298 = vmatprep.mubr.bf16.mxu0 %v1041
      %1299 = vmatmul.mubr.bf16.gmra.mxu0 %v1040
      %v1300 = vpop.f32.mrf.mxu0
      %v1301 = vadd.f32 0.0, %v1300
      %v1302 = vpop.f32.mrf.mxu0
      %v1303 = vpop.f32.mrf.mxu0
      %v1304 = vadd.f32 0.0, %v1303
      %v1305 = vpop.f32.mrf.mxu0
      %1306 = vmatprep.mubr.bf16.mxu0 %v1043
      %1307 = vmatmul.mubr.bf16.gmra.mxu0 %v1042
      %v1308 = vpop.f32.mrf.mxu0
      %v1309 = vadd.f32 0.0, %v1308
      %v1310 = vpop.f32.mrf.mxu0
      %v1311 = vpop.f32.mrf.mxu0
      %v1312 = vadd.f32 0.0, %v1311
      %v1313 = vpop.f32.mrf.mxu0
      %1314 = vmatprep.mubr.bf16.mxu0 %v1045
      %1315 = vmatmul.mubr.bf16.gmra.mxu0 %v1044
      %v1316 = vpop.f32.mrf.mxu0
      %v1317 = vadd.f32 0.0, %v1316
      %v1318 = vpop.f32.mrf.mxu0
      %v1319 = vpop.f32.mrf.mxu0
      %v1320 = vadd.f32 0.0, %v1319
      %v1321 = vpop.f32.mrf.mxu0
      %1322 = vmatprep.mubr.bf16.mxu0 %v1047
      %1323 = vmatmul.mubr.bf16.gmra.mxu0 %v1046
      %v1324 = vpop.f32.mrf.mxu0
      %v1325 = vadd.f32 0.0, %v1324
      %v1326 = vpop.f32.mrf.mxu0
      %v1327 = vpop.f32.mrf.mxu0
      %v1328 = vadd.f32 0.0, %v1327
      %v1329 = vpop.f32.mrf.mxu0
      %1330 = vmatprep.mubr.bf16.mxu0 %v1049
      %1331 = vmatmul.mubr.bf16.gmra.mxu0 %v1048
      %v1332 = vpop.f32.mrf.mxu0
      %v1333 = vadd.f32 0.0, %v1332
      %v1334 = vpop.f32.mrf.mxu0
      %v1335 = vpop.f32.mrf.mxu0
      %v1336 = vadd.f32 0.0, %v1335
      %v1337 = vpop.f32.mrf.mxu0
      %1338 = vdwg.mxu0
      %v1339 = vld [vmem:[%s5] sm:$0xff]
      %v1340 = vld [vmem:[%s5 + $0x8] sm:$0xff]
      %v1341 = vld [vmem:[%s5 + $0x10] sm:$0xff]
      %v1342 = vld [vmem:[%s257] sm:$0xf]
      %v1343 = vld [vmem:[%s257 + $0x4] sm:$0xf]
      %v1344 = vld [vmem:[%s257 + $0x8] sm:$0xf]
      %v1345 = vld [vmem:[%s257 + $0xc] sm:$0xf]
      %v1346 = vld [vmem:[%s257 + $0x10] sm:$0xf]
      %v1347 = vld [vmem:[%s257 + $0x14] sm:$0xf]
      %v1348 = vld [vmem:[%s257 + $0x18] sm:$0xf]
      %v1349 = vld [vmem:[%s257 + $0x1c] sm:$0xf]
      %v1350 = vld [vmem:[%s257 + $0x20] sm:$0xf]
      %v1351 = vld [vmem:[%s257 + $0x24] sm:$0xf]
      %v1352 = vld [vmem:[%s257 + $0x28] sm:$0xf]
      %v1353 = vld [vmem:[%s257 + $0x2c] sm:$0xf]
      %v1354 = vld [vmem:[%s257 + $0x30] sm:$0xf]
      %v1355 = vld [vmem:[%s257 + $0x34] sm:$0xf]
      %v1356 = vld [vmem:[%s257 + $0x38] sm:$0xf]
      %v1357 = vld [vmem:[%s257 + $0x3c] sm:$0xf]
      %v1358 = vld [vmem:[%s257 + $0x40] sm:$0xf]
      %v1359 = vld [vmem:[%s257 + $0x44] sm:$0xf]
      %v1360 = vld [vmem:[%s257 + $0x48] sm:$0xf]
      %v1361 = vld [vmem:[%s257 + $0x4c] sm:$0xf]
      %v1362 = vld [vmem:[%s257 + $0x50] sm:$0xf]
      %v1363 = vld [vmem:[%s257 + $0x54] sm:$0xf]
      %v1364 = vld [vmem:[%s257 + $0x58] sm:$0xf]
      %v1365 = vld [vmem:[%s257 + $0x5c] sm:$0xf]
      %v1366 = vld [vmem:[%s257 + $0x60] sm:$0xf]
      %v1367 = vld [vmem:[%s257 + $0x64] sm:$0xf]
      %v1368 = vld [vmem:[%s257 + $0x68] sm:$0xf]
      %v1369 = vld [vmem:[%s257 + $0x6c] sm:$0xf]
      %v1370 = vld [vmem:[%s257 + $0x70] sm:$0xf]
      %v1371 = vld [vmem:[%s257 + $0x74] sm:$0xf]
      %v1372 = vld [vmem:[%s257 + $0x78] sm:$0xf]
      %v1373 = vld [vmem:[%s257 + $0x7c] sm:$0xf]
      %v1374 = vpack.c.bf16 %v1216, %v1213
      %v1375 = vpack.c.bf16 %v1224, %v1221
      %v1376 = vpack.c.bf16 %v1232, %v1229
      %v1377 = vpack.c.bf16 %v1240, %v1237
      %v1378 = vpack.c.bf16 %v1248, %v1245
      %v1379 = vpack.c.bf16 %v1256, %v1253
      %v1380 = vpack.c.bf16 %v1264, %v1261
      %v1381 = vpack.c.bf16 %v1272, %v1269
      %v1382 = vpack.c.bf16 %v1280, %v1277
      %v1383 = vpack.c.bf16 %v1288, %v1285
      %v1384 = vpack.c.bf16 %v1296, %v1293
      %v1385 = vpack.c.bf16 %v1304, %v1301
      %v1386 = vpack.c.bf16 %v1312, %v1309
      %v1387 = vpack.c.bf16 %v1320, %v1317
      %v1388 = vpack.c.bf16 %v1328, %v1325
      %v1389 = vpack.c.bf16 %v1336, %v1333
      %v1422 = vunpack.c.l.b16 %v1342
      %v1423 = vunpack.c.l.b16 %v1343
      %v1424 = vunpack.c.l.b16 %v1344
      %v1425 = vunpack.c.l.b16 %v1345
      %v1426 = vunpack.c.l.b16 %v1346
      %v1427 = vunpack.c.l.b16 %v1347
      %v1428 = vunpack.c.l.b16 %v1348
      %v1429 = vunpack.c.l.b16 %v1349
      %v1430 = vunpack.c.l.b16 %v1350
      %v1431 = vunpack.c.l.b16 %v1351
      %v1432 = vunpack.c.l.b16 %v1352
      %v1433 = vunpack.c.l.b16 %v1353
      %v1434 = vunpack.c.l.b16 %v1354
      %v1435 = vunpack.c.l.b16 %v1355
      %v1436 = vunpack.c.l.b16 %v1356
      %v1437 = vunpack.c.l.b16 %v1357
      %v1438 = vunpack.c.l.b16 %v1358
      %v1439 = vunpack.c.l.b16 %v1359
      %v1440 = vunpack.c.l.b16 %v1360
      %v1441 = vunpack.c.l.b16 %v1361
      %v1442 = vunpack.c.l.b16 %v1362
      %v1443 = vunpack.c.l.b16 %v1363
      %v1444 = vunpack.c.l.b16 %v1364
      %v1445 = vunpack.c.l.b16 %v1365
      %v1446 = vunpack.c.l.b16 %v1366
      %v1447 = vunpack.c.l.b16 %v1367
      %v1448 = vunpack.c.l.b16 %v1368
      %v1449 = vunpack.c.l.b16 %v1369
      %v1450 = vunpack.c.l.b16 %v1370
      %v1451 = vunpack.c.l.b16 %v1371
      %v1452 = vunpack.c.l.b16 %v1372
      %v1453 = vunpack.c.l.b16 %v1373
      %v1454 = vpack.c.b16 %v1423, %v1422
      %v1455 = vpack.c.b16 %v1425, %v1424
      %v1456 = vpack.c.b16 %v1427, %v1426
      %v1457 = vpack.c.b16 %v1429, %v1428
      %v1458 = vpack.c.b16 %v1431, %v1430
      %v1459 = vpack.c.b16 %v1433, %v1432
      %v1460 = vpack.c.b16 %v1435, %v1434
      %v1461 = vpack.c.b16 %v1437, %v1436
      %v1462 = vpack.c.b16 %v1439, %v1438
      %v1463 = vpack.c.b16 %v1441, %v1440
      %v1464 = vpack.c.b16 %v1443, %v1442
      %v1465 = vpack.c.b16 %v1445, %v1444
      %v1466 = vpack.c.b16 %v1447, %v1446
      %v1467 = vpack.c.b16 %v1449, %v1448
      %v1468 = vpack.c.b16 %v1451, %v1450
      %v1469 = vpack.c.b16 %v1453, %v1452
      %1486 = vxpose.xlu0.c.b16.start [1/8] %v1454, 128
      %1487 = vxpose.xlu0.c.b16.cont [2/8] %v1455, 128
      %1488 = vxpose.xlu0.c.b16.cont [3/8] %v1456, 128
      %1489 = vxpose.xlu0.c.b16.cont [4/8] %v1457, 128
      %1490 = vxpose.xlu0.c.b16.cont [5/8] %v1458, 128
      %1491 = vxpose.xlu0.c.b16.cont [6/8] %v1459, 128
      %1492 = vxpose.xlu0.c.b16.cont [7/8] %v1460, 128
      %1493 = vxpose.xlu0.c.b16.end [8/8] %v1461, 128
      %v1494 = vpop.trf.xlu0
      %v1495 = vpop.trf.xlu0
      %v1496 = vpop.trf.xlu0
      %v1497 = vpop.trf.xlu0
      %v1498 = vpop.trf.xlu0
      %v1499 = vpop.trf.xlu0
      %v1500 = vpop.trf.xlu0
      %v1501 = vpop.trf.xlu0
      %1502 = vxpose.xlu0.c.b16.start [1/8] %v1462, 128
      %1503 = vxpose.xlu0.c.b16.cont [2/8] %v1463, 128
      %1504 = vxpose.xlu0.c.b16.cont [3/8] %v1464, 128
      %1505 = vxpose.xlu0.c.b16.cont [4/8] %v1465, 128
      %1506 = vxpose.xlu0.c.b16.cont [5/8] %v1466, 128
      %1507 = vxpose.xlu0.c.b16.cont [6/8] %v1467, 128
      %1508 = vxpose.xlu0.c.b16.cont [7/8] %v1468, 128
      %1509 = vxpose.xlu0.c.b16.end [8/8] %v1469, 128
      %v1510 = vpop.trf.xlu0
      %v1511 = vpop.trf.xlu0
      %v1512 = vpop.trf.xlu0
      %v1513 = vpop.trf.xlu0
      %v1514 = vpop.trf.xlu0
      %v1515 = vpop.trf.xlu0
      %v1516 = vpop.trf.xlu0
      %v1517 = vpop.trf.xlu0
      %1518 = vmatprep.subr.bf16.mxu0 0
      %1519 = vmatpush1.bf16.msra.mxu0 %v1381
      %1520 = vmatprep.subr.bf16.mxu0 0
      %1521 = vmatpush1.bf16.msra.mxu0 %v1380
      %1522 = vmatprep.subr.bf16.mxu0 0
      %1523 = vmatpush1.bf16.msra.mxu0 %v1379
      %1524 = vmatprep.subr.bf16.mxu0 0
      %1525 = vmatpush1.bf16.msra.mxu0 %v1378
      %1526 = vmatprep.subr.bf16.mxu0 0
      %1527 = vmatpush1.bf16.msra.mxu0 %v1377
      %1528 = vmatprep.subr.bf16.mxu0 0
      %1529 = vmatpush1.bf16.msra.mxu0 %v1376
      %1530 = vmatprep.subr.bf16.mxu0 0
      %1531 = vmatpush1.bf16.msra.mxu0 %v1375
      %1532 = vmatprep.subr.bf16.mxu0 0
      %1533 = vmatpush1.bf16.msra.mxu0 %v1374
      %1534 = vmatprep.subr.bf16.mxu0 0
      %1535 = vmatpush2.bf16.msra.mxu0 %v1389
      %1536 = vmatprep.subr.bf16.mxu0 0
      %1537 = vmatpush2.bf16.msra.mxu0 %v1388
      %1538 = vmatprep.subr.bf16.mxu0 0
      %1539 = vmatpush2.bf16.msra.mxu0 %v1387
      %1540 = vmatprep.subr.bf16.mxu0 0
      %1541 = vmatpush2.bf16.msra.mxu0 %v1386
      %1542 = vmatprep.subr.bf16.mxu0 0
      %1543 = vmatpush2.bf16.msra.mxu0 %v1385
      %1544 = vmatprep.subr.bf16.mxu0 0
      %1545 = vmatpush2.bf16.msra.mxu0 %v1384
      %1546 = vmatprep.subr.bf16.mxu0 0
      %1547 = vmatpush2.bf16.msra.mxu0 %v1383
      %1548 = vmatprep.subr.bf16.mxu0 0
      %1549 = vmatpush2.bf16.msra.mxu0 %v1382
      %1550 = vmatprep.mubr.bf16.mxu0 %v1510
      %1551 = vmatmul.mubr.bf16.gmra.mxu0 %v1494
      %v1552 = vpop.f32.mrf.mxu0
      %v1553 = vadd.f32 0.0, %v1552
      %v1554 = vpop.f32.mrf.mxu0
      %v1555 = vpop.f32.mrf.mxu0
      %v1556 = vadd.f32 0.0, %v1555
      %v1557 = vpop.f32.mrf.mxu0
      %1558 = vmatprep.mubr.bf16.mxu0 %v1511
      %1559 = vmatmul.mubr.bf16.gmra.mxu0 %v1495
      %v1560 = vpop.f32.mrf.mxu0
      %v1561 = vadd.f32 0.0, %v1560
      %v1562 = vpop.f32.mrf.mxu0
      %v1563 = vpop.f32.mrf.mxu0
      %v1564 = vpop.f32.mrf.mxu0
      %1565 = vdwg.mxu0
      %v1566 = vadd.f32 %v1339, %v1553
      %v1567 = vadd.f32 %v1340, %v1556
      %v1568 = vadd.f32 %v1341, %v1561
      %1569 = vst.msk [vmem:[%s5] sm:$0xff] %vm392, %v1566
      %1570 = vst.msk [vmem:[%s5 + $0x8] sm:$0xff] %vm392, %v1567
      %1571 = vst.msk [vmem:[%s5 + $0x10] sm:$0xff] %vm392, %v1568
      // Predicated region
      $region45: #{tpu_custom_call.1} parent=39 // pred_check
        %p1572 = pneg %p149
      $region46: #{tpu_custom_call.1} parent=39 // pred_check_branch
        %1574 = sbr.rel (%p1572) target = $region48
      $region47: #{tpu_custom_call.1} parent=39 // pred_region
        _
      $region48: #{tpu_custom_call.1} parent=39 // pred_fallthru
        _
      // Predicated region
      $region49: #{tpu_custom_call.1} parent=39 // pred_check
        %p1575 = pneg %p149
      $region50: #{tpu_custom_call.1} parent=39 // pred_check_branch
        %1577 = sbr.rel (%p1575) target = $region52
      $region51: #{tpu_custom_call.1} parent=39 // pred_region
        _
      $region52: #{tpu_custom_call.1} parent=39 // pred_fallthru
        _
    $region40: #{tpu_custom_call.1} parent=5 // pred_fallthru
      _
    %p1578 = scmp.le.s32.totalorder 2, %s11
    // Predicated region
    $region53: #{tpu_custom_call.1} parent=5 // pred_check
      %p1579 = pneg %p1578
    $region54: #{tpu_custom_call.1} parent=5 // pred_check_branch
      %1581 = sbr.rel (%p1579) target = $region56
    $region55: #{tpu_custom_call.1} parent=5 // pred_region
      %s1582 = ssub.s32 %s11, 2
    $region56: #{tpu_custom_call.1} parent=5 // pred_fallthru
      _
  $region6: #{tpu_custom_call.1} parent=0 // loop_footer
    %s15 = sadd.s32 1, %s11
  $region7: #{tpu_custom_call.1} parent=0 // loop_footer_branch
    %10 = sbr.rel target = $region3
  $region8: #{tpu_custom_call.1} parent=0 // loop_exit
    _

</llo_original>
